<compile_context>
chip_gen: v6e
topology: v6e:2x2x1
jax: 0.10.0
libtpu: 0.0.40
codegen_flags: <defaults>
</compile_context>

<pallas_src>
import functools

import jax
import jax.numpy as jnp
from jax.experimental import pallas as pl
from jax.experimental.pallas import tpu as pltpu


def _round_up(n, m):
    return ((n + m - 1) // m) * m


def _attn_block_kernel(x_ref, wq_ref, bq_ref, wkv_ref, bkv_ref, wo_ref, bo_ref,
                       o_ref, kt_ref, v_ref, q_ref, ctx_ref,
                       *, heads, q_block, seq_len):
    """One (batch, q-block) grid step of the fused attention block.

    x_ref   : (S_pad, E)  bf16  full (padded) sequence of the current batch element
    wq_ref  : (E, E)      bf16  W_q^T with 1/sqrt(dh) folded in
    bq_ref  : (1, E)      f32   b_q * 1/sqrt(dh)
    wkv_ref : (E, 2E)     bf16  [W_k^T | W_v^T]
    bkv_ref : (1, 2E)     f32   [b_k | b_v]
    wo_ref  : (E, E)      bf16  W_o^T
    bo_ref  : (1, E)      f32   b_o
    o_ref   : (Tq, E)           output block
    kt_ref  : (E, S_pad)  bf16  scratch: K^T, cached across q-blocks
    v_ref   : (S_pad, E)  bf16  scratch: V, cached across q-blocks
    q_ref   : (Tq, E)     bf16  scratch: Q of this q-block
    ctx_ref : (Tq, E)     bf16  scratch: per-head contexts assembled lane-dense
    """
    qi = pl.program_id(1)
    S_pad, E = x_ref.shape
    dh = E // heads
    f32, bf16 = jnp.float32, jnp.bfloat16

    # --- K/V projection once per batch element (q-block axis is "arbitrary"). ---
    @pl.when(qi == 0)
    def _():
        kv = jnp.dot(x_ref[...], wkv_ref[...], preferred_element_type=f32)
        kv = kv + bkv_ref[...]                                  # (S_pad, 2E) f32
        kt_ref[...] = kv[:, :E].T.astype(bf16)                  # one transpose / batch elem
        v_ref[...] = kv[:, E:].astype(bf16)

    # --- Query projection for this q-block (softmax scale pre-folded into W_q / b_q). ---
    q_start = pl.multiple_of(qi * q_block, q_block)
    xq = x_ref[pl.ds(q_start, q_block), :]                      # (Tq, E) bf16
    q = jnp.dot(xq, wq_ref[...], preferred_element_type=f32) + bq_ref[...]
    q_ref[...] = q.astype(bf16)

    # --- Key-padding mask (only emitted when the sequence was padded; static cond). ---
    padded = S_pad != seq_len
    if padded:
        key_idx = jax.lax.broadcasted_iota(jnp.int32, (q_block, S_pad), 1)
        key_valid = key_idx < seq_len

    # --- Per-head attention.  Static unroll with static head slices: no dynamic
    # sub-128-lane indexing, and no value carried across heads (each iteration ends
    # at a scratch store), so live ranges stay bounded per head. ---
    for h in range(heads):
        r = slice(h * dh, (h + 1) * dh)
        s = jnp.dot(q_ref[:, r], kt_ref[r, :],
                    preferred_element_type=f32)                 # (Tq, S_pad)
        if padded:
            s = jnp.where(key_valid, s, -1e30)
        s = s - jnp.max(s, axis=-1, keepdims=True)
        p = jnp.exp(s)
        inv_l = pl.reciprocal(jnp.sum(p, axis=-1, keepdims=True), approx=True)
        ctx = jnp.dot(p.astype(bf16), v_ref[:, r],
                      preferred_element_type=f32)               # (Tq, dh)
        ctx_ref[:, r] = (ctx * inv_l).astype(bf16)

    # --- Single full-depth (K = E) output projection + bias. ---
    out = jnp.dot(ctx_ref[...], wo_ref[...], preferred_element_type=f32) + bo_ref[...]
    o_ref[...] = out.astype(o_ref.dtype)


def pack_dino2_attention_params(params, heads):
    """One-time weight prep: PyTorch Linear W:(out,in) -> (in,out), K|V fused, bf16,
    softmax scale folded into W_q / b_q.  Call once at model-load time, not per step."""
    E = params["wq"].shape[0]
    assert E % heads == 0
    dh = E // heads
    scale = 1.0 / (dh ** 0.5)
    f32, bf16 = jnp.float32, jnp.bfloat16
    return {
        "wq_t": (params["wq"].T * scale).astype(bf16),                              # (E, E)
        "bq": (params["bq"] * scale).reshape(1, E).astype(f32),
        "wkv_t": jnp.concatenate([params["wk"].T, params["wv"].T], axis=1).astype(bf16),  # (E, 2E)
        "bkv": jnp.concatenate([params["bk"], params["bv"]]).reshape(1, 2 * E).astype(f32),
        "wo_t": params["wo"].T.astype(bf16),                                        # (E, E)
        "bo": params["bo"].reshape(1, E).astype(f32),
    }


def _pick_vmem_limit_bytes():
    # v5e/v6e: 128 MiB physical VMEM -> allow ~100 MiB; v7x: 64 MiB -> stay <= ~56 MiB.
    try:
        cap = getattr(pltpu.get_tpu_info(), "vmem_capacity_bytes", 64 * 1024 * 1024)
    except Exception:
        cap = 64 * 1024 * 1024
    return int(min(cap - 8 * 1024 * 1024, 100 * 1024 * 1024))


def dino2_attention_block(x, packed, heads, q_block=128):
    """x: (B, S, E); packed = pack_dino2_attention_params(params, heads).

    Returns output.dense(BertAttention(x, mask=None)) of shape (B, S, E).
    """
    B, S, E = x.shape
    assert E % heads == 0 and E % 128 == 0
    assert q_block % 8 == 0
    q_block = min(q_block, _round_up(S, 8))
    S_pad = _round_up(S, q_block)

    x_in = x
    if S_pad != S:
        x_in = jnp.pad(x_in, ((0, 0), (0, S_pad - S), (0, 0)))
    x_in = x_in.astype(jnp.bfloat16)      # bf16 stream: halves HBM + VMEM traffic for x

    kernel = functools.partial(_attn_block_kernel, heads=heads, q_block=q_block, seq_len=S)
    const = lambda b, qi: (0, 0)          # grid-invariant weight/bias tiles (no re-DMA)
    # NOTE: on v7x (64 MiB VMEM) the resident weights could additionally be
    # single-buffered via pipeline_mode=pl.Buffered(1) to reclaim VMEM at giant shapes.

    out = pl.pallas_call(
        kernel,
        out_shape=jax.ShapeDtypeStruct((B, S_pad, E), x.dtype),
        grid_spec=pltpu.PrefetchScalarGridSpec(
            num_scalar_prefetch=0,
            grid=(B, S_pad // q_block),
            in_specs=[
                # Full (padded) sequence per batch element; batch dim squeezed so the
                # kernel sees lane-dense 2-D tiles.
                pl.BlockSpec((pl.Squeezed(), S_pad, E), lambda b, qi: (b, 0, 0)),
                pl.BlockSpec((E, E), const),        # W_q^T (scale folded)
                pl.BlockSpec((1, E), const),        # b_q   (scale folded)
                pl.BlockSpec((E, 2 * E), const),    # [W_k^T | W_v^T]
                pl.BlockSpec((1, 2 * E), const),    # [b_k | b_v]
                pl.BlockSpec((E, E), const),        # W_o^T
                pl.BlockSpec((1, E), const),        # b_o
            ],
            out_specs=pl.BlockSpec((pl.Squeezed(), q_block, E),
                                   lambda b, qi: (b, qi, 0)),
            scratch_shapes=[
                pltpu.VMEM((E, S_pad), jnp.bfloat16),     # K^T cache
                pltpu.VMEM((S_pad, E), jnp.bfloat16),     # V cache
                pltpu.VMEM((q_block, E), jnp.bfloat16),   # Q of this q-block
                pltpu.VMEM((q_block, E), jnp.bfloat16),   # assembled per-head contexts
            ],
        ),
        compiler_params=pltpu.CompilerParams(
            # Batch axis sharded across TensorCores; q-block axis sequential so the
            # K/V scratch is reused across q-blocks of a batch element.
            dimension_semantics=("parallel", "arbitrary"),
            vmem_limit_bytes=_pick_vmem_limit_bytes(),
        ),
    )(x_in, packed["wq_t"], packed["bq"], packed["wkv_t"], packed["bkv"],
      packed["wo_t"], packed["bo"])
    return out[:, :S, :]


def _reference(x, params, heads):
    """Pure-JAX f32 reference matching the PyTorch forward semantics."""
    B, S, E = x.shape
    dh = E // heads
    scale = 1.0 / (dh ** 0.5)

    def lin(z, w, b):
        return jnp.einsum("bse,oe->bso", z, w) + b

    q = lin(x, params["wq"], params["bq"])
    k = lin(x, params["wk"], params["bk"])
    v = lin(x, params["wv"], params["bv"])

    def split(z):  # (B,S,E) -> (B,H,S,dh)
        return z.reshape(B, S, heads, dh).transpose(0, 2, 1, 3)

    qh, kh, vh = split(q), split(k), split(v)
    s = jnp.einsum("bhqd,bhkd->bhqk", qh, kh) * scale
    p = jax.nn.softmax(s, axis=-1)
    ctx = jnp.einsum("bhqk,bhkd->bhqd", p, vh)
    ctx = ctx.transpose(0, 2, 1, 3).reshape(B, S, E)
    return lin(ctx, params["wo"], params["bo"])


if __name__ == "__main__":
    # Small but representative: E multiple of 128, dh = 64 like real DINOv2, and
    # S = 20 is NOT a multiple of the q-block -> exercises the pad + key-mask path.
    B, S, E, HEADS = 2, 20, 256, 4
    Q_BLOCK = 8                            # grid = (B, S_pad // 8) = (2, 3)

    key = jax.random.PRNGKey(0)
    keys = jax.random.split(key, 9)
    init = lambda k, shape: jax.random.normal(k, shape, jnp.float32) * 0.05

    params = {
        "wq": init(keys[0], (E, E)), "bq": init(keys[1], (E,)),
        "wk": init(keys[2], (E, E)), "bk": init(keys[3], (E,)),
        "wv": init(keys[4], (E, E)), "bv": init(keys[5], (E,)),
        "wo": init(keys[6], (E, E)), "bo": init(keys[7], (E,)),
    }
    x = jax.random.normal(keys[8], (B, S, E), jnp.float32)

    packed = pack_dino2_attention_params(params, HEADS)   # once, at "load time"
    out = dino2_attention_block(x, packed, HEADS, q_block=Q_BLOCK)
    out = jax.block_until_ready(out)

    ref = _reference(x, params, HEADS)
    assert out.shape == (B, S, E)
    err = float(jnp.max(jnp.abs(out - ref)))
    # bf16 matmul inputs + approximate reciprocal -> looser tolerance than pure f32.
    assert jnp.allclose(out, ref, atol=5e-2, rtol=5e-2), err

    print("KERNEL_OK")
</pallas_src>

<mosaic_0001>
module attributes {stable_mosaic.version = 11 : i64} {
  func.func @_attn_block_kernel(%arg0: i32, %arg1: i32, %arg2: memref<1x24x256xbf16, #tpu.memory_space<vmem>>, %arg3: memref<256x256xbf16, #tpu.memory_space<vmem>>, %arg4: memref<1x256xf32, #tpu.memory_space<vmem>>, %arg5: memref<256x512xbf16, #tpu.memory_space<vmem>>, %arg6: memref<1x512xf32, #tpu.memory_space<vmem>>, %arg7: memref<256x256xbf16, #tpu.memory_space<vmem>>, %arg8: memref<1x256xf32, #tpu.memory_space<vmem>>, %arg9: memref<1x8x256xf32, #tpu.memory_space<vmem>>, %arg10: memref<256x24xbf16, #tpu.memory_space<vmem>>, %arg11: memref<24x256xbf16, #tpu.memory_space<vmem>>, %arg12: memref<8x256xbf16, #tpu.memory_space<vmem>>, %arg13: memref<8x256xbf16, #tpu.memory_space<vmem>>) attributes {dimension_semantics = [#tpu.dimension_semantics<parallel>, #tpu.dimension_semantics<arbitrary>], iteration_bounds = array<i64: 2, 3>, scalar_prefetch = 0 : i64, scratch_operands = 4 : i64, tpu.core_type = #tpu.core_type<tc>, window_params = [{transform_indices = @transform_0, window_bounds = array<i64: 1, 24, 256>}, {pipeline_mode = #tpu.pipeline_mode<synchronous>, transform_indices = @transform_1, window_bounds = array<i64: 256, 256>}, {pipeline_mode = #tpu.pipeline_mode<synchronous>, transform_indices = @transform_2, window_bounds = array<i64: 1, 256>}, {pipeline_mode = #tpu.pipeline_mode<synchronous>, transform_indices = @transform_3, window_bounds = array<i64: 256, 512>}, {pipeline_mode = #tpu.pipeline_mode<synchronous>, transform_indices = @transform_4, window_bounds = array<i64: 1, 512>}, {pipeline_mode = #tpu.pipeline_mode<synchronous>, transform_indices = @transform_5, window_bounds = array<i64: 256, 256>}, {pipeline_mode = #tpu.pipeline_mode<synchronous>, transform_indices = @transform_6, window_bounds = array<i64: 1, 256>}, {transform_indices = @transform_7, window_bounds = array<i64: 1, 8, 256>}]} {
    %c0_i32 = arith.constant 0 : i32
    %0 = arith.cmpi eq, %arg1, %c0_i32 : i32
    %1 = arith.extui %0 : i1 to i32
    %c0_i32_0 = arith.constant 0 : i32
    %2 = arith.cmpi ne, %1, %c0_i32_0 : i32
    scf.if %2 {
      %c0_67 = arith.constant 0 : index
      %c0_68 = arith.constant 0 : index
      %c0_69 = arith.constant 0 : index
      %107 = vector.load %arg2[%c0_67, %c0_68, %c0_69] : memref<1x24x256xbf16, #tpu.memory_space<vmem>>, vector<1x24x256xbf16>
      %108 = vector.shape_cast %107 : vector<1x24x256xbf16> to vector<24x256xbf16>
      %c0_70 = arith.constant 0 : index
      %c0_71 = arith.constant 0 : index
      %109 = vector.load %arg5[%c0_70, %c0_71] : memref<256x512xbf16, #tpu.memory_space<vmem>>, vector<256x512xbf16>
      %cst_72 = arith.constant dense<0.000000e+00> : vector<24x512xf32>
      %110 = tpu.matmul %108, %109, %cst_72 {dimension_numbers = #tpu.dot_dimension_numbers<[1], [0], [0], [1], [0, 0, 1, 1], [], []>} : vector<24x256xbf16>, vector<256x512xbf16>, vector<24x512xf32> -> vector<24x512xf32>
      %c0_73 = arith.constant 0 : index
      %c0_74 = arith.constant 0 : index
      %111 = vector.load %arg6[%c0_73, %c0_74] : memref<1x512xf32, #tpu.memory_space<vmem>>, vector<1x512xf32>
      %112 = vector.broadcast %111 : vector<1x512xf32> to vector<24x512xf32>
      %113 = arith.addf %110, %112 : vector<24x512xf32>
      %114 = vector.extract_strided_slice %113 {offsets = [0, 0], sizes = [24, 256], strides = [1, 1]} : vector<24x512xf32> to vector<24x256xf32>
      %115 = tpu.transpose %114, [1, 0] : vector<24x256xf32> -> vector<256x24xf32>
      %116 = arith.truncf %115 : vector<256x24xf32> to vector<256x24xbf16>
      %c0_75 = arith.constant 0 : index
      %c0_76 = arith.constant 0 : index
      %117 = vector.load %arg10[%c0_75, %c0_76] : memref<256x24xbf16, #tpu.memory_space<vmem>>, vector<256x24xbf16>
      tpu.vector_store %arg10[%c0_75, %c0_76], %116 {strides = array<i32>} : memref<256x24xbf16, #tpu.memory_space<vmem>>, vector<256x24xbf16>,
      %118 = vector.extract_strided_slice %113 {offsets = [0, 256], sizes = [24, 256], strides = [1, 1]} : vector<24x512xf32> to vector<24x256xf32>
      %119 = arith.truncf %118 : vector<24x256xf32> to vector<24x256xbf16>
      %c0_77 = arith.constant 0 : index
      %c0_78 = arith.constant 0 : index
      %120 = vector.load %arg11[%c0_77, %c0_78] : memref<24x256xbf16, #tpu.memory_space<vmem>>, vector<24x256xbf16>
      tpu.vector_store %arg11[%c0_77, %c0_78], %119 {strides = array<i32>} : memref<24x256xbf16, #tpu.memory_space<vmem>>, vector<24x256xbf16>,
    } else {
    }
    %c8_i32 = arith.constant 8 : i32
    %3 = arith.muli %arg1, %c8_i32 : i32
    %4 = tpu.assume_multiple %3, 8 : i32
    %c0 = arith.constant 0 : index
    %5 = arith.index_cast %4 : i32 to index
    %c0_1 = arith.constant 0 : index
    %6 = vector.load %arg2[%c0, %5, %c0_1] : memref<1x24x256xbf16, #tpu.memory_space<vmem>>, vector<1x8x256xbf16>
    %7 = vector.shape_cast %6 : vector<1x8x256xbf16> to vector<8x256xbf16>
    %c0_2 = arith.constant 0 : index
    %c0_3 = arith.constant 0 : index
    %8 = vector.load %arg3[%c0_2, %c0_3] : memref<256x256xbf16, #tpu.memory_space<vmem>>, vector<256x256xbf16>
    %cst = arith.constant dense<0.000000e+00> : vector<8x256xf32>
    %9 = tpu.matmul %7, %8, %cst {dimension_numbers = #tpu.dot_dimension_numbers<[1], [0], [0], [1], [0, 0, 1, 1], [], []>} : vector<8x256xbf16>, vector<256x256xbf16>, vector<8x256xf32> -> vector<8x256xf32>
    %c0_4 = arith.constant 0 : index
    %c0_5 = arith.constant 0 : index
    %10 = vector.load %arg4[%c0_4, %c0_5] : memref<1x256xf32, #tpu.memory_space<vmem>>, vector<1x256xf32>
    %11 = vector.broadcast %10 : vector<1x256xf32> to vector<8x256xf32>
    %12 = arith.addf %9, %11 : vector<8x256xf32>
    %13 = arith.truncf %12 : vector<8x256xf32> to vector<8x256xbf16>
    %c0_6 = arith.constant 0 : index
    %c0_7 = arith.constant 0 : index
    %14 = vector.load %arg12[%c0_6, %c0_7] : memref<8x256xbf16, #tpu.memory_space<vmem>>, vector<8x256xbf16>
    tpu.vector_store %arg12[%c0_6, %c0_7], %13 {strides = array<i32>} : memref<8x256xbf16, #tpu.memory_space<vmem>>, vector<8x256xbf16>,
    %15 = tpu.iota {dimensions = array<i32: 1>} : vector<8x24xi32>
    %c20_i32 = arith.constant 20 : i32
    %16 = vector.broadcast %c20_i32 : i32 to vector<8x24xi32>
    %17 = arith.cmpi slt, %15, %16 : vector<8x24xi32>
    %c0_8 = arith.constant 0 : index
    %c0_9 = arith.constant 0 : index
    %18 = vector.load %arg12[%c0_8, %c0_9] : memref<8x256xbf16, #tpu.memory_space<vmem>>, vector<8x64xbf16>
    %c0_10 = arith.constant 0 : index
    %c0_11 = arith.constant 0 : index
    %19 = vector.load %arg10[%c0_10, %c0_11] : memref<256x24xbf16, #tpu.memory_space<vmem>>, vector<64x24xbf16>
    %cst_12 = arith.constant dense<0.000000e+00> : vector<8x24xf32>
    %20 = tpu.matmul %18, %19, %cst_12 {dimension_numbers = #tpu.dot_dimension_numbers<[1], [0], [0], [1], [0, 0, 1, 1], [], []>} : vector<8x64xbf16>, vector<64x24xbf16>, vector<8x24xf32> -> vector<8x24xf32>
    %cst_13 = arith.constant -1.000000e+30 : f32
    %21 = vector.broadcast %cst_13 : f32 to vector<8x24xf32>
    %22 = arith.select %17, %20, %21 : vector<8x24xi1>, vector<8x24xf32>
    %cst_14 = arith.constant dense<0xFF800000> : vector<8xf32>
    %23 = vector.multi_reduction <maximumf>, %22, %cst_14 [1] : vector<8x24xf32> to vector<8xf32>
    %24 = vector.shape_cast %23 : vector<8xf32> to vector<8x1xf32>
    %25 = vector.broadcast %24 : vector<8x1xf32> to vector<8x24xf32>
    %26 = arith.subf %22, %25 : vector<8x24xf32>
    %27 = math.exp %26 : vector<8x24xf32>
    %cst_15 = arith.constant dense<0.000000e+00> : vector<8xf32>
    %28 = vector.multi_reduction <add>, %27, %cst_15 [1] : vector<8x24xf32> to vector<8xf32>
    %29 = vector.shape_cast %28 : vector<8xf32> to vector<8x1xf32>
    %30 = tpu.reciprocal %29 {approx = true} : vector<8x1xf32> -> vector<8x1xf32>
    %31 = arith.truncf %27 : vector<8x24xf32> to vector<8x24xbf16>
    %c0_16 = arith.constant 0 : index
    %c0_17 = arith.constant 0 : index
    %32 = vector.load %arg11[%c0_16, %c0_17] : memref<24x256xbf16, #tpu.memory_space<vmem>>, vector<24x64xbf16>
    %cst_18 = arith.constant dense<0.000000e+00> : vector<8x64xf32>
    %33 = tpu.matmul %31, %32, %cst_18 {dimension_numbers = #tpu.dot_dimension_numbers<[1], [0], [0], [1], [0, 0, 1, 1], [], []>} : vector<8x24xbf16>, vector<24x64xbf16>, vector<8x64xf32> -> vector<8x64xf32>
    %34 = vector.broadcast %30 : vector<8x1xf32> to vector<8x64xf32>
    %35 = arith.mulf %33, %34 : vector<8x64xf32>
    %36 = arith.truncf %35 : vector<8x64xf32> to vector<8x64xbf16>
    %c0_19 = arith.constant 0 : index
    %c0_20 = arith.constant 0 : index
    %37 = vector.load %arg13[%c0_19, %c0_20] : memref<8x256xbf16, #tpu.memory_space<vmem>>, vector<8x64xbf16>
    tpu.vector_store %arg13[%c0_19, %c0_20], %36 {strides = array<i32>} : memref<8x256xbf16, #tpu.memory_space<vmem>>, vector<8x64xbf16>,
    %c0_21 = arith.constant 0 : index
    %c64 = arith.constant 64 : index
    %38 = vector.load %arg12[%c0_21, %c64] : memref<8x256xbf16, #tpu.memory_space<vmem>>, vector<8x64xbf16>
    %c64_22 = arith.constant 64 : index
    %c0_23 = arith.constant 0 : index
    %39 = vector.load %arg10[%c64_22, %c0_23] : memref<256x24xbf16, #tpu.memory_space<vmem>>, vector<64x24xbf16>
    %cst_24 = arith.constant dense<0.000000e+00> : vector<8x24xf32>
    %40 = tpu.matmul %38, %39, %cst_24 {dimension_numbers = #tpu.dot_dimension_numbers<[1], [0], [0], [1], [0, 0, 1, 1], [], []>} : vector<8x64xbf16>, vector<64x24xbf16>, vector<8x24xf32> -> vector<8x24xf32>
    %cst_25 = arith.constant -1.000000e+30 : f32
    %41 = vector.broadcast %cst_25 : f32 to vector<8x24xf32>
    %42 = arith.select %17, %40, %41 : vector<8x24xi1>, vector<8x24xf32>
    %cst_26 = arith.constant dense<0xFF800000> : vector<8xf32>
    %43 = vector.multi_reduction <maximumf>, %42, %cst_26 [1] : vector<8x24xf32> to vector<8xf32>
    %44 = vector.shape_cast %43 : vector<8xf32> to vector<8x1xf32>
    %45 = vector.broadcast %44 : vector<8x1xf32> to vector<8x24xf32>
    %46 = arith.subf %42, %45 : vector<8x24xf32>
    %47 = math.exp %46 : vector<8x24xf32>
    %cst_27 = arith.constant dense<0.000000e+00> : vector<8xf32>
    %48 = vector.multi_reduction <add>, %47, %cst_27 [1] : vector<8x24xf32> to vector<8xf32>
    %49 = vector.shape_cast %48 : vector<8xf32> to vector<8x1xf32>
    %50 = tpu.reciprocal %49 {approx = true} : vector<8x1xf32> -> vector<8x1xf32>
    %51 = arith.truncf %47 : vector<8x24xf32> to vector<8x24xbf16>
    %c0_28 = arith.constant 0 : index
    %c64_29 = arith.constant 64 : index
    %52 = vector.load %arg11[%c0_28, %c64_29] : memref<24x256xbf16, #tpu.memory_space<vmem>>, vector<24x64xbf16>
    %cst_30 = arith.constant dense<0.000000e+00> : vector<8x64xf32>
    %53 = tpu.matmul %51, %52, %cst_30 {dimension_numbers = #tpu.dot_dimension_numbers<[1], [0], [0], [1], [0, 0, 1, 1], [], []>} : vector<8x24xbf16>, vector<24x64xbf16>, vector<8x64xf32> -> vector<8x64xf32>
    %54 = vector.broadcast %50 : vector<8x1xf32> to vector<8x64xf32>
    %55 = arith.mulf %53, %54 : vector<8x64xf32>
    %56 = arith.truncf %55 : vector<8x64xf32> to vector<8x64xbf16>
    %c0_31 = arith.constant 0 : index
    %c64_32 = arith.constant 64 : index
    %57 = vector.load %arg13[%c0_31, %c64_32] : memref<8x256xbf16, #tpu.memory_space<vmem>>, vector<8x64xbf16>
    tpu.vector_store %arg13[%c0_31, %c64_32], %56 {strides = array<i32>} : memref<8x256xbf16, #tpu.memory_space<vmem>>, vector<8x64xbf16>,
    %c0_33 = arith.constant 0 : index
    %c128 = arith.constant 128 : index
    %58 = vector.load %arg12[%c0_33, %c128] : memref<8x256xbf16, #tpu.memory_space<vmem>>, vector<8x64xbf16>
    %c128_34 = arith.constant 128 : index
    %c0_35 = arith.constant 0 : index
    %59 = vector.load %arg10[%c128_34, %c0_35] : memref<256x24xbf16, #tpu.memory_space<vmem>>, vector<64x24xbf16>
    %cst_36 = arith.constant dense<0.000000e+00> : vector<8x24xf32>
    %60 = tpu.matmul %58, %59, %cst_36 {dimension_numbers = #tpu.dot_dimension_numbers<[1], [0], [0], [1], [0, 0, 1, 1], [], []>} : vector<8x64xbf16>, vector<64x24xbf16>, vector<8x24xf32> -> vector<8x24xf32>
    %cst_37 = arith.constant -1.000000e+30 : f32
    %61 = vector.broadcast %cst_37 : f32 to vector<8x24xf32>
    %62 = arith.select %17, %60, %61 : vector<8x24xi1>, vector<8x24xf32>
    %cst_38 = arith.constant dense<0xFF800000> : vector<8xf32>
    %63 = vector.multi_reduction <maximumf>, %62, %cst_38 [1] : vector<8x24xf32> to vector<8xf32>
    %64 = vector.shape_cast %63 : vector<8xf32> to vector<8x1xf32>
    %65 = vector.broadcast %64 : vector<8x1xf32> to vector<8x24xf32>
    %66 = arith.subf %62, %65 : vector<8x24xf32>
    %67 = math.exp %66 : vector<8x24xf32>
    %cst_39 = arith.constant dense<0.000000e+00> : vector<8xf32>
    %68 = vector.multi_reduction <add>, %67, %cst_39 [1] : vector<8x24xf32> to vector<8xf32>
    %69 = vector.shape_cast %68 : vector<8xf32> to vector<8x1xf32>
    %70 = tpu.reciprocal %69 {approx = true} : vector<8x1xf32> -> vector<8x1xf32>
    %71 = arith.truncf %67 : vector<8x24xf32> to vector<8x24xbf16>
    %c0_40 = arith.constant 0 : index
    %c128_41 = arith.constant 128 : index
    %72 = vector.load %arg11[%c0_40, %c128_41] : memref<24x256xbf16, #tpu.memory_space<vmem>>, vector<24x64xbf16>
    %cst_42 = arith.constant dense<0.000000e+00> : vector<8x64xf32>
    %73 = tpu.matmul %71, %72, %cst_42 {dimension_numbers = #tpu.dot_dimension_numbers<[1], [0], [0], [1], [0, 0, 1, 1], [], []>} : vector<8x24xbf16>, vector<24x64xbf16>, vector<8x64xf32> -> vector<8x64xf32>
    %74 = vector.broadcast %70 : vector<8x1xf32> to vector<8x64xf32>
    %75 = arith.mulf %73, %74 : vector<8x64xf32>
    %76 = arith.truncf %75 : vector<8x64xf32> to vector<8x64xbf16>
    %c0_43 = arith.constant 0 : index
    %c128_44 = arith.constant 128 : index
    %77 = vector.load %arg13[%c0_43, %c128_44] : memref<8x256xbf16, #tpu.memory_space<vmem>>, vector<8x64xbf16>
    tpu.vector_store %arg13[%c0_43, %c128_44], %76 {strides = array<i32>} : memref<8x256xbf16, #tpu.memory_space<vmem>>, vector<8x64xbf16>,
    %c0_45 = arith.constant 0 : index
    %c192 = arith.constant 192 : index
    %78 = vector.load %arg12[%c0_45, %c192] : memref<8x256xbf16, #tpu.memory_space<vmem>>, vector<8x64xbf16>
    %c192_46 = arith.constant 192 : index
    %c0_47 = arith.constant 0 : index
    %79 = vector.load %arg10[%c192_46, %c0_47] : memref<256x24xbf16, #tpu.memory_space<vmem>>, vector<64x24xbf16>
    %cst_48 = arith.constant dense<0.000000e+00> : vector<8x24xf32>
    %80 = tpu.matmul %78, %79, %cst_48 {dimension_numbers = #tpu.dot_dimension_numbers<[1], [0], [0], [1], [0, 0, 1, 1], [], []>} : vector<8x64xbf16>, vector<64x24xbf16>, vector<8x24xf32> -> vector<8x24xf32>
    %cst_49 = arith.constant -1.000000e+30 : f32
    %81 = vector.broadcast %cst_49 : f32 to vector<8x24xf32>
    %82 = arith.select %17, %80, %81 : vector<8x24xi1>, vector<8x24xf32>
    %cst_50 = arith.constant dense<0xFF800000> : vector<8xf32>
    %83 = vector.multi_reduction <maximumf>, %82, %cst_50 [1] : vector<8x24xf32> to vector<8xf32>
    %84 = vector.shape_cast %83 : vector<8xf32> to vector<8x1xf32>
    %85 = vector.broadcast %84 : vector<8x1xf32> to vector<8x24xf32>
    %86 = arith.subf %82, %85 : vector<8x24xf32>
    %87 = math.exp %86 : vector<8x24xf32>
    %cst_51 = arith.constant dense<0.000000e+00> : vector<8xf32>
    %88 = vector.multi_reduction <add>, %87, %cst_51 [1] : vector<8x24xf32> to vector<8xf32>
    %89 = vector.shape_cast %88 : vector<8xf32> to vector<8x1xf32>
    %90 = tpu.reciprocal %89 {approx = true} : vector<8x1xf32> -> vector<8x1xf32>
    %91 = arith.truncf %87 : vector<8x24xf32> to vector<8x24xbf16>
    %c0_52 = arith.constant 0 : index
    %c192_53 = arith.constant 192 : index
    %92 = vector.load %arg11[%c0_52, %c192_53] : memref<24x256xbf16, #tpu.memory_space<vmem>>, vector<24x64xbf16>
    %cst_54 = arith.constant dense<0.000000e+00> : vector<8x64xf32>
    %93 = tpu.matmul %91, %92, %cst_54 {dimension_numbers = #tpu.dot_dimension_numbers<[1], [0], [0], [1], [0, 0, 1, 1], [], []>} : vector<8x24xbf16>, vector<24x64xbf16>, vector<8x64xf32> -> vector<8x64xf32>
    %94 = vector.broadcast %90 : vector<8x1xf32> to vector<8x64xf32>
    %95 = arith.mulf %93, %94 : vector<8x64xf32>
    %96 = arith.truncf %95 : vector<8x64xf32> to vector<8x64xbf16>
    %c0_55 = arith.constant 0 : index
    %c192_56 = arith.constant 192 : index
    %97 = vector.load %arg13[%c0_55, %c192_56] : memref<8x256xbf16, #tpu.memory_space<vmem>>, vector<8x64xbf16>
    tpu.vector_store %arg13[%c0_55, %c192_56], %96 {strides = array<i32>} : memref<8x256xbf16, #tpu.memory_space<vmem>>, vector<8x64xbf16>,
    %c0_57 = arith.constant 0 : index
    %c0_58 = arith.constant 0 : index
    %98 = vector.load %arg13[%c0_57, %c0_58] : memref<8x256xbf16, #tpu.memory_space<vmem>>, vector<8x256xbf16>
    %c0_59 = arith.constant 0 : index
    %c0_60 = arith.constant 0 : index
    %99 = vector.load %arg7[%c0_59, %c0_60] : memref<256x256xbf16, #tpu.memory_space<vmem>>, vector<256x256xbf16>
    %cst_61 = arith.constant dense<0.000000e+00> : vector<8x256xf32>
    %100 = tpu.matmul %98, %99, %cst_61 {dimension_numbers = #tpu.dot_dimension_numbers<[1], [0], [0], [1], [0, 0, 1, 1], [], []>} : vector<8x256xbf16>, vector<256x256xbf16>, vector<8x256xf32> -> vector<8x256xf32>
    %c0_62 = arith.constant 0 : index
    %c0_63 = arith.constant 0 : index
    %101 = vector.load %arg8[%c0_62, %c0_63] : memref<1x256xf32, #tpu.memory_space<vmem>>, vector<1x256xf32>
    %102 = vector.broadcast %101 : vector<1x256xf32> to vector<8x256xf32>
    %103 = arith.addf %100, %102 : vector<8x256xf32>
    %c0_64 = arith.constant 0 : index
    %c0_65 = arith.constant 0 : index
    %c0_66 = arith.constant 0 : index
    %104 = vector.load %arg9[%c0_64, %c0_65, %c0_66] : memref<1x8x256xf32, #tpu.memory_space<vmem>>, vector<1x8x256xf32>
    %105 = vector.shape_cast %104 : vector<1x8x256xf32> to vector<8x256xf32>
    %106 = vector.shape_cast %103 : vector<8x256xf32> to vector<1x8x256xf32>
    tpu.vector_store %arg9[%c0_64, %c0_65, %c0_66], %106 {strides = array<i32>} : memref<1x8x256xf32, #tpu.memory_space<vmem>>, vector<1x8x256xf32>,
    return
  }
  func.func @transform_0(%arg0: i32, %arg1: i32) -> (i32, i32, i32) {
    %c0_i32 = arith.constant 0 : i32
    %c0_i32_0 = arith.constant 0 : i32
    %c0_i32_1 = arith.constant 0 : i32
    return %arg0, %c0_i32, %c0_i32_0 : i32, i32, i32
  }
  func.func @transform_1(%arg0: i32, %arg1: i32) -> (i32, i32) {
    %c0_i32 = arith.constant 0 : i32
    %c0_i32_0 = arith.constant 0 : i32
    %c0_i32_1 = arith.constant 0 : i32
    return %c0_i32, %c0_i32_0 : i32, i32
  }
  func.func @transform_2(%arg0: i32, %arg1: i32) -> (i32, i32) {
    %c0_i32 = arith.constant 0 : i32
    %c0_i32_0 = arith.constant 0 : i32
    %c0_i32_1 = arith.constant 0 : i32
    return %c0_i32, %c0_i32_0 : i32, i32
  }
  func.func @transform_3(%arg0: i32, %arg1: i32) -> (i32, i32) {
    %c0_i32 = arith.constant 0 : i32
    %c0_i32_0 = arith.constant 0 : i32
    %c0_i32_1 = arith.constant 0 : i32
    return %c0_i32, %c0_i32_0 : i32, i32
  }
  func.func @transform_4(%arg0: i32, %arg1: i32) -> (i32, i32) {
    %c0_i32 = arith.constant 0 : i32
    %c0_i32_0 = arith.constant 0 : i32
    %c0_i32_1 = arith.constant 0 : i32
    return %c0_i32, %c0_i32_0 : i32, i32
  }
  func.func @transform_5(%arg0: i32, %arg1: i32) -> (i32, i32) {
    %c0_i32 = arith.constant 0 : i32
    %c0_i32_0 = arith.constant 0 : i32
    %c0_i32_1 = arith.constant 0 : i32
    return %c0_i32, %c0_i32_0 : i32, i32
  }
  func.func @transform_6(%arg0: i32, %arg1: i32) -> (i32, i32) {
    %c0_i32 = arith.constant 0 : i32
    %c0_i32_0 = arith.constant 0 : i32
    %c0_i32_1 = arith.constant 0 : i32
    return %c0_i32, %c0_i32_0 : i32, i32
  }
  func.func @transform_7(%arg0: i32, %arg1: i32) -> (i32, i32, i32) {
    %c0_i32 = arith.constant 0 : i32
    %c0_i32_0 = arith.constant 0 : i32
    return %arg0, %arg1, %c0_i32 : i32, i32, i32
  }
}

</mosaic_0001>

<llo_original>
// kernel: tpu_custom_call.1
$region0: #{tpu_custom_call.1}
  #allocation0 [shape = 'u32[]', space=smem, size = 0x4, offset = 0x4, fixed_abs, tag = 'smem constant byte address 0x4 - core index']
  #allocation1 [shape = 'u32[144,128]{1,0:T(1,128)}', space=vmem, size = 0x12000, scoped, tag = 'internal scratch']
  #allocation2 [shape = 'bf16[256,24]{1,0:T(8,128)(2,1)}', space=vmem, size = 0x10000, scoped, tag = 'scratch operand']
  #allocation3 [shape = 'bf16[24,256]{1,0:T(8,128)(2,1)}', space=vmem, size = 0x3000, scoped, tag = 'scratch operand']
  #allocation4 [shape = 'bf16[8,256]{1,0:T(8,128)(2,1)}', space=vmem, size = 0x1000, scoped, tag = 'scratch operand']
  #allocation5 [shape = 'bf16[8,256]{1,0:T(8,128)(2,1)}', space=vmem, size = 0x1000, scoped, tag = 'scratch operand']
  %s0 = inlined_call_operand.hbm [shape: bf16[2,24,256], index: 0, kind: input, shape index: {}]
  %s1 = inlined_call_operand.hbm [shape: bf16[256,256], index: 1, kind: input, shape index: {}]
  %s2 = inlined_call_operand.vmem [shape: f32[1,256], index: 2, kind: input, shape index: {}]
  %s3 = inlined_call_operand.hbm [shape: bf16[256,512], index: 3, kind: input, shape index: {}]
  %s4 = inlined_call_operand.vmem [shape: f32[1,512], index: 4, kind: input, shape index: {}]
  %s5 = inlined_call_operand.hbm [shape: bf16[256,256], index: 5, kind: input, shape index: {}]
  %s6 = inlined_call_operand.vmem [shape: f32[1,256], index: 6, kind: input, shape index: {}]
  %s7 = inlined_call_operand.hbm [shape: f32[2,24,256], index: 7, kind: output, shape index: {}]
  %s8 = sld [smem:[#allocation0]]
  $region81: #{tpu_custom_call.1} parent=0
    _
  %s10 = ssub.s32 1, %s8
  %s11 = scalar_select 0, %s10, %s8
  $region1: #{tpu_custom_call.1} parent=0
    #allocation6 [shape = 'u8[24576]{0}', space=vmem, size = 0x6000, scoped, tag = 'input window, operand 0']
    #allocation7 [shape = 's32[2]{0}', space=sflag, size = 0x8, scoped, tag = 'scoped memory for tpu_custom_call.1']
    #allocation8 [shape = 's32[2]{0}', space=sflag, size = 0x8, scoped, tag = 'scoped memory for tpu_custom_call.1']
    #allocation9 [shape = 'u8[131072]{0}', space=vmem, size = 0x20000, scoped, tag = 'input window, operand 1, single buffered']
    #allocation10 [shape = 's32[1]{0}', space=sflag, size = 0x4, scoped, tag = 'scoped memory for tpu_custom_call.1']
    #allocation11 [shape = 'u8[262144]{0}', space=vmem, size = 0x40000, scoped, tag = 'input window, operand 3, single buffered']
    #allocation12 [shape = 'u8[131072]{0}', space=vmem, size = 0x20000, scoped, tag = 'input window, operand 5, single buffered']
    #allocation13 [shape = 's32[1]{0}', space=sflag, size = 0x4, scoped, tag = 'scoped memory for tpu_custom_call.1']
    #allocation14 [shape = 'u8[16384]{0}', space=vmem, size = 0x4000, scoped, tag = 'output window, operand 0']
    %12 = vsyncpa [#allocation7], 0
    %s13 = scalar_lea.sflag [#allocation7], 1
    %14 = vsyncpa %s13, 0
    %15 = vsyncpa [#allocation10], 0
    %16 = vsyncpa [#allocation13], 0
    %17 = vsyncpa [#allocation8], 0
    %s18 = scalar_lea.sflag [#allocation8], 1
    %19 = vsyncpa %s18, 0
    loop: start=0, step=1, limit=8
    $region2: #{tpu_custom_call.1} parent=1 // loop_pre_header
      _
    $region3: #{tpu_custom_call.1} parent=1 // loop_header
      %s21 = sphi 0, %s25
      %p22 = scmp.ge.s32.totalorder %s21, 8
      %s28 = sphi 0, %s40
      %s29 = sphi 0, %s36
      %s30 = sphi 0, %s28
      %s31 = sphi 0, %s29
      %s32 = sphi 0, %s30
      %s33 = sphi 0, %s31
      %s43 = sphi 0, %s45
      %s46 = sphi 0, %s43
      %s47 = sphi 0, %s46
      %s63 = sphi 0, %s47
      %s67 = sphi 0, %s67
      %s69 = sphi 0, %s67
      %s70 = sphi 0, %s69
      %s84 = sphi 0, %s70
      %s88 = sphi 0, %s88
      %s90 = sphi 0, %s88
      %s91 = sphi 0, %s90
      %s105 = sphi 0, %s91
      %s109 = sphi 0, %s109
      %s111 = sphi 0, %s109
      %s112 = sphi 0, %s111
      %s126 = sphi 0, %s112
      %s130 = sphi 0, %s130
      %s132 = sphi 0, %s130
      %s133 = sphi 0, %s132
      %s147 = sphi 0, %s133
      %s151 = sphi 0, %s151
      %s153 = sphi 0, %s151
      %s154 = sphi 0, %s153
      %s168 = sphi 0, %s154
      %s172 = sphi 0, %s172
      %s174 = sphi 0, %s172
      %s175 = sphi 0, %s174
      %s189 = sphi 0, %s175
      %s197 = sphi 0, %s199
      %s200 = sphi 0, %s197
      %s201 = sphi 0, %s200
      %s217 = sphi 0, %s201
    $region4: #{tpu_custom_call.1} parent=1 // loop_header_branch
      %24 = sbr.rel (%p22) target = $region8
    $region5: #{tpu_custom_call.1} parent=1 // loop_body
      %s26 = ssub.s32 %s21, 1
      %s27 = ssub.s32 %s21, 2
      %s34 = sadd.s32 1, %s29
      %p35 = scmp.ge.s32.totalorder %s34, 3
      %s36 = scalar_select %p35, 0, %s34
      %s37 = sadd.s32 1, %s28
      %s38 = scalar_select %p35, %s37, %s28
      %p39 = scmp.ge.s32.totalorder %s38, 2
      %s40 = scalar_select %p39, 0, %s38
      %s41 = ssub.s32 %s28, %s40
      %p42 = scmp.eq.s32.totalorder %s41, 0
      %s44 = sadd.s32 %s43, 1
      %s45 = scalar_select %p42, %s43, %s44
      %p48 = pneg %p42
      %p49 = scmp.eq.s32.totalorder %s21, 5
      %p50 = por %p48, %p49
      %p51 = scmp.ne.s32.totalorder %s43, %s46
      %p52 = scmp.eq.s32.totalorder %s21, 0
      %p53 = por %p51, %p52
      %p54 = scmp.ne.s32.totalorder %s43, %s46
      %p55 = scmp.eq.s32.totalorder %s26, 5
      %p56 = por %p54, %p55
      %p57 = scmp.ne.s32.totalorder %s46, %s47
      %p58 = scmp.eq.s32.totalorder %s26, 0
      %p59 = por %p57, %p58
      %p60 = scmp.ne.s32.totalorder %s46, %s47
      %p61 = scmp.eq.s32.totalorder %s27, 5
      %p62 = por %p60, %p61
      %p64 = scmp.ne.s32.totalorder %s47, %s63
      %p65 = scmp.eq.s32.totalorder %s27, 0
      %p66 = por %p64, %p65
      %s68 = sadd.s32 %s67, 1
      %p71 = scmp.eq.s32.totalorder %s21, 5
      %p72 = scmp.ne.s32.totalorder %s67, %s69
      %p73 = scmp.eq.s32.totalorder %s21, 0
      %p74 = por %p72, %p73
      %p75 = scmp.ne.s32.totalorder %s67, %s69
      %p76 = scmp.eq.s32.totalorder %s26, 5
      %p77 = por %p75, %p76
      %p78 = scmp.ne.s32.totalorder %s69, %s70
      %p79 = scmp.eq.s32.totalorder %s26, 0
      %p80 = por %p78, %p79
      %p81 = scmp.ne.s32.totalorder %s69, %s70
      %p82 = scmp.eq.s32.totalorder %s27, 5
      %p83 = por %p81, %p82
      %p85 = scmp.ne.s32.totalorder %s70, %s84
      %p86 = scmp.eq.s32.totalorder %s27, 0
      %p87 = por %p85, %p86
      %s89 = sadd.s32 %s88, 1
      %p92 = scmp.eq.s32.totalorder %s21, 5
      %p93 = scmp.ne.s32.totalorder %s88, %s90
      %p94 = scmp.eq.s32.totalorder %s21, 0
      %p95 = por %p93, %p94
      %p96 = scmp.ne.s32.totalorder %s88, %s90
      %p97 = scmp.eq.s32.totalorder %s26, 5
      %p98 = por %p96, %p97
      %p99 = scmp.ne.s32.totalorder %s90, %s91
      %p100 = scmp.eq.s32.totalorder %s26, 0
      %p101 = por %p99, %p100
      %p102 = scmp.ne.s32.totalorder %s90, %s91
      %p103 = scmp.eq.s32.totalorder %s27, 5
      %p104 = por %p102, %p103
      %p106 = scmp.ne.s32.totalorder %s91, %s105
      %p107 = scmp.eq.s32.totalorder %s27, 0
      %p108 = por %p106, %p107
      %s110 = sadd.s32 %s109, 1
      %p113 = scmp.eq.s32.totalorder %s21, 5
      %p114 = scmp.ne.s32.totalorder %s109, %s111
      %p115 = scmp.eq.s32.totalorder %s21, 0
      %p116 = por %p114, %p115
      %p117 = scmp.ne.s32.totalorder %s109, %s111
      %p118 = scmp.eq.s32.totalorder %s26, 5
      %p119 = por %p117, %p118
      %p120 = scmp.ne.s32.totalorder %s111, %s112
      %p121 = scmp.eq.s32.totalorder %s26, 0
      %p122 = por %p120, %p121
      %p123 = scmp.ne.s32.totalorder %s111, %s112
      %p124 = scmp.eq.s32.totalorder %s27, 5
      %p125 = por %p123, %p124
      %p127 = scmp.ne.s32.totalorder %s112, %s126
      %p128 = scmp.eq.s32.totalorder %s27, 0
      %p129 = por %p127, %p128
      %s131 = sadd.s32 %s130, 1
      %p134 = scmp.eq.s32.totalorder %s21, 5
      %p135 = scmp.ne.s32.totalorder %s130, %s132
      %p136 = scmp.eq.s32.totalorder %s21, 0
      %p137 = por %p135, %p136
      %p138 = scmp.ne.s32.totalorder %s130, %s132
      %p139 = scmp.eq.s32.totalorder %s26, 5
      %p140 = por %p138, %p139
      %p141 = scmp.ne.s32.totalorder %s132, %s133
      %p142 = scmp.eq.s32.totalorder %s26, 0
      %p143 = por %p141, %p142
      %p144 = scmp.ne.s32.totalorder %s132, %s133
      %p145 = scmp.eq.s32.totalorder %s27, 5
      %p146 = por %p144, %p145
      %p148 = scmp.ne.s32.totalorder %s133, %s147
      %p149 = scmp.eq.s32.totalorder %s27, 0
      %p150 = por %p148, %p149
      %s152 = sadd.s32 %s151, 1
      %p155 = scmp.eq.s32.totalorder %s21, 5
      %p156 = scmp.ne.s32.totalorder %s151, %s153
      %p157 = scmp.eq.s32.totalorder %s21, 0
      %p158 = por %p156, %p157
      %p159 = scmp.ne.s32.totalorder %s151, %s153
      %p160 = scmp.eq.s32.totalorder %s26, 5
      %p161 = por %p159, %p160
      %p162 = scmp.ne.s32.totalorder %s153, %s154
      %p163 = scmp.eq.s32.totalorder %s26, 0
      %p164 = por %p162, %p163
      %p165 = scmp.ne.s32.totalorder %s153, %s154
      %p166 = scmp.eq.s32.totalorder %s27, 5
      %p167 = por %p165, %p166
      %p169 = scmp.ne.s32.totalorder %s154, %s168
      %p170 = scmp.eq.s32.totalorder %s27, 0
      %p171 = por %p169, %p170
      %s173 = sadd.s32 %s172, 1
      %p176 = scmp.eq.s32.totalorder %s21, 5
      %p177 = scmp.ne.s32.totalorder %s172, %s174
      %p178 = scmp.eq.s32.totalorder %s21, 0
      %p179 = por %p177, %p178
      %p180 = scmp.ne.s32.totalorder %s172, %s174
      %p181 = scmp.eq.s32.totalorder %s26, 5
      %p182 = por %p180, %p181
      %p183 = scmp.ne.s32.totalorder %s174, %s175
      %p184 = scmp.eq.s32.totalorder %s26, 0
      %p185 = por %p183, %p184
      %p186 = scmp.ne.s32.totalorder %s174, %s175
      %p187 = scmp.eq.s32.totalorder %s27, 5
      %p188 = por %p186, %p187
      %p190 = scmp.ne.s32.totalorder %s175, %s189
      %p191 = scmp.eq.s32.totalorder %s27, 0
      %p192 = por %p190, %p191
      %s193 = ssub.s32 %s28, %s40
      %s194 = ssub.s32 %s29, %s36
      %s195 = sor.u32 %s193, %s194
      %p196 = scmp.eq.s32.totalorder %s195, 0
      %s198 = sadd.s32 %s197, 1
      %s199 = scalar_select %p196, %s197, %s198
      %p202 = pneg %p196
      %p203 = scmp.eq.s32.totalorder %s21, 5
      %p204 = por %p202, %p203
      %p205 = scmp.ne.s32.totalorder %s197, %s200
      %p206 = scmp.eq.s32.totalorder %s21, 0
      %p207 = por %p205, %p206
      %p208 = scmp.ne.s32.totalorder %s197, %s200
      %p209 = scmp.eq.s32.totalorder %s26, 5
      %p210 = por %p208, %p209
      %p211 = scmp.ne.s32.totalorder %s200, %s201
      %p212 = scmp.eq.s32.totalorder %s26, 0
      %p213 = por %p211, %p212
      %p214 = scmp.ne.s32.totalorder %s200, %s201
      %p215 = scmp.eq.s32.totalorder %s27, 5
      %p216 = por %p214, %p215
      %p218 = scmp.ne.s32.totalorder %s201, %s217
      %p219 = scmp.eq.s32.totalorder %s27, 0
      %p220 = por %p218, %p219
      %p221 = scmp.le.s32.totalorder 1, %s21
      %p222 = scmp.lt.s32.totalorder %s21, 7
      %p223 = pnand %p221, %p222
      %p224 = pneg %p223
      // Predicated region
      $region9: #{tpu_custom_call.1} parent=5 // pred_check
        _
      $region10: #{tpu_custom_call.1} parent=5 // pred_check_branch
        %226 = sbr.rel (%p223) target = $region12
      $region11: #{tpu_custom_call.1} parent=5 // pred_region
        %s227 = ssub.s32 %s21, 1
        // Predicated region
        $region13: #{tpu_custom_call.1} parent=11 // pred_check
          %p228 = pneg %p80
        $region14: #{tpu_custom_call.1} parent=11 // pred_check_branch
          %230 = sbr.rel (%p228) target = $region16
        $region15: #{tpu_custom_call.1} parent=11 // pred_region
          %s232 = ssub.s32 4096, 4096
          %233 = vsyncadd [#allocation10], %s232
          %s234 = sshll.u32 [#allocation9], 4
          %s235 = int_to_ptr.vmem [resolvable:$true] %s234
          %240 = dma.hbm_to_vmem [thread:$0]  %s1, 4096, %s235, [#allocation10], 128, 128, 8
        $region16: #{tpu_custom_call.1} parent=11 // pred_fallthru
          _
        // Predicated region
        $region17: #{tpu_custom_call.1} parent=11 // pred_check
          %p241 = pneg %p101
        $region18: #{tpu_custom_call.1} parent=11 // pred_check_branch
          %243 = sbr.rel (%p241) target = $region20
        $region19: #{tpu_custom_call.1} parent=11 // pred_region
          _
        $region20: #{tpu_custom_call.1} parent=11 // pred_fallthru
          _
        // Predicated region
        $region21: #{tpu_custom_call.1} parent=11 // pred_check
          %p244 = pneg %p122
        $region22: #{tpu_custom_call.1} parent=11 // pred_check_branch
          %246 = sbr.rel (%p244) target = $region24
        $region23: #{tpu_custom_call.1} parent=11 // pred_region
          %s248 = ssub.s32 8192, 8192
          %249 = vsyncadd [#allocation10], %s248
          %s250 = sshll.u32 [#allocation11], 4
          %s251 = int_to_ptr.vmem [resolvable:$true] %s250
          %256 = dma.hbm_to_vmem [thread:$0]  %s3, 8192, %s251, [#allocation10], 256, 256, 16
        $region24: #{tpu_custom_call.1} parent=11 // pred_fallthru
          _
        // Predicated region
        $region25: #{tpu_custom_call.1} parent=11 // pred_check
          %p257 = pneg %p143
        $region26: #{tpu_custom_call.1} parent=11 // pred_check_branch
          %259 = sbr.rel (%p257) target = $region28
        $region27: #{tpu_custom_call.1} parent=11 // pred_region
          _
        $region28: #{tpu_custom_call.1} parent=11 // pred_fallthru
          _
        // Predicated region
        $region29: #{tpu_custom_call.1} parent=11 // pred_check
          %p260 = pneg %p164
        $region30: #{tpu_custom_call.1} parent=11 // pred_check_branch
          %262 = sbr.rel (%p260) target = $region32
        $region31: #{tpu_custom_call.1} parent=11 // pred_region
          %s264 = ssub.s32 4096, 4096
          %265 = vsyncadd [#allocation13], %s264
          %s266 = sshll.u32 [#allocation12], 4
          %s267 = int_to_ptr.vmem [resolvable:$true] %s266
          %272 = dma.hbm_to_vmem [thread:$0]  %s5, 4096, %s267, [#allocation13], 128, 128, 8
        $region32: #{tpu_custom_call.1} parent=11 // pred_fallthru
          _
        // Predicated region
        $region33: #{tpu_custom_call.1} parent=11 // pred_check
          %p273 = pneg %p185
        $region34: #{tpu_custom_call.1} parent=11 // pred_check_branch
          %275 = sbr.rel (%p273) target = $region36
        $region35: #{tpu_custom_call.1} parent=11 // pred_region
          _
        $region36: #{tpu_custom_call.1} parent=11 // pred_fallthru
          _
      $region12: #{tpu_custom_call.1} parent=5 // pred_fallthru
        _
      %p276 = scmp.lt.s32.totalorder %s21, 6
      // Predicated region
      $region37: #{tpu_custom_call.1} parent=5 // pred_check
        %p277 = pneg %p276
      $region38: #{tpu_custom_call.1} parent=5 // pred_check_branch
        %279 = sbr.rel (%p277) target = $region40
      $region39: #{tpu_custom_call.1} parent=5 // pred_region
        // Predicated region
        $region41: #{tpu_custom_call.1} parent=39 // pred_check
          %p280 = pneg %p53
        $region42: #{tpu_custom_call.1} parent=39 // pred_check_branch
          %282 = sbr.rel (%p280) target = $region44
        $region43: #{tpu_custom_call.1} parent=39 // pred_region
          %s283 = sand.u32 %s43, 1
          %s284 = scalar_lea.sflag [#allocation7], %s283
          %s285 = sand.u32 %s43, 1
          %s286 = smul.addr %s285, 24
          %s287 = scalar_lea.vmem [#allocation6], %s286
          %s289 = ssub.s32 384, 384
          %290 = vsyncadd %s284, %s289
          %s291 = smul.addr %s28, 6
          %s292 = smul.addr %s291, 64
          %s293 = scalar_lea.hbm %s0, %s292
          %s294 = sshll.u32 %s287, 4
          %s295 = int_to_ptr.vmem [resolvable:$true] %s294
          %300 = dma.hbm_to_vmem [thread:$0]  %s293, 384, %s295, %s284, 128, 128, 8
        $region44: #{tpu_custom_call.1} parent=39 // pred_fallthru
          _
      $region40: #{tpu_custom_call.1} parent=5 // pred_fallthru
        _
      %p301 = scmp.le.s32.totalorder 1, %s21
      %p302 = scmp.lt.s32.totalorder %s21, 7
      %p303 = pnand %p301, %p302
      %p304 = pneg %p303
      // Predicated region
      $region45: #{tpu_custom_call.1} parent=5 // pred_check
        _
      $region46: #{tpu_custom_call.1} parent=5 // pred_check_branch
        %306 = sbr.rel (%p303) target = $region48
      $region47: #{tpu_custom_call.1} parent=5 // pred_region
        %s307 = ssub.s32 %s21, 1
        %s308 = sand.u32 %s46, 1
        %s309 = scalar_lea.sflag [#allocation7], %s308
        %s310 = sand.u32 %s46, 1
        %s311 = smul.addr %s310, 24
        %s312 = scalar_lea.vmem [#allocation6], %s311
        // Predicated region
        $region49: #{tpu_custom_call.1} parent=47 // pred_check
          %p313 = pneg %p59
        $region50: #{tpu_custom_call.1} parent=47 // pred_check_branch
          %315 = sbr.rel (%p313) target = $region52
        $region51: #{tpu_custom_call.1} parent=47 // pred_region
          %316 = dma.done %s309, 384
        $region52: #{tpu_custom_call.1} parent=47 // pred_fallthru
          _
        // Predicated region
        $region53: #{tpu_custom_call.1} parent=47 // pred_check
          %p317 = pneg %p80
        $region54: #{tpu_custom_call.1} parent=47 // pred_check_branch
          %319 = sbr.rel (%p317) target = $region56
        $region55: #{tpu_custom_call.1} parent=47 // pred_region
          %320 = dma.done [#allocation10], 4096
        $region56: #{tpu_custom_call.1} parent=47 // pred_fallthru
          _
        // Predicated region
        $region57: #{tpu_custom_call.1} parent=47 // pred_check
          %p321 = pneg %p122
        $region58: #{tpu_custom_call.1} parent=47 // pred_check_branch
          %323 = sbr.rel (%p321) target = $region60
        $region59: #{tpu_custom_call.1} parent=47 // pred_region
          %324 = dma.done [#allocation10], 8192
        $region60: #{tpu_custom_call.1} parent=47 // pred_fallthru
          _
        // Predicated region
        $region61: #{tpu_custom_call.1} parent=47 // pred_check
          %p325 = pneg %p164
        $region62: #{tpu_custom_call.1} parent=47 // pred_check_branch
          %327 = sbr.rel (%p325) target = $region64
        $region63: #{tpu_custom_call.1} parent=47 // pred_region
          %328 = dma.done [#allocation13], 4096
        $region64: #{tpu_custom_call.1} parent=47 // pred_fallthru
          _
        %s329 = sand.u32 %s46, 1
        %s330 = scalar_lea.sflag [#allocation7], %s329
        %s331 = sand.u32 %s46, 1
        %s332 = smul.addr %s331, 24
        %s333 = scalar_lea.vmem [#allocation6], %s332
        %p334 = pneg %p59
        %p335 = pneg %p56
        %p336 = pneg %p80
        %p337 = pneg %p77
        %p338 = pneg %p101
        %p339 = pneg %p98
        %p340 = pneg %p122
        %p341 = pneg %p119
        %p342 = pneg %p143
        %p343 = pneg %p140
        %p344 = pneg %p164
        %p345 = pneg %p161
        %p346 = pneg %p185
        %p347 = pneg %p182
        %p348 = pneg %p213
        %p349 = pneg %p210
        %s350 = sand.u32 %s200, 1
        %s351 = scalar_lea.sflag [#allocation8], %s350
        %s352 = sand.u32 %s200, 1
        %s353 = smul.addr %s352, 16
        %s354 = scalar_lea.vmem [#allocation14], %s353
        %p356 = scmp.eq.s32.totalorder %s31, 0
        // Predicated region
        $region65: #{tpu_custom_call.1} parent=47 // pred_check
          %p357 = pneg %p356
        $region66: #{tpu_custom_call.1} parent=47 // pred_check_branch
          %359 = sbr.rel (%p357) target = $region68
        $region67: #{tpu_custom_call.1} parent=47 // pred_region
          %v360 = vld [vmem:[%s312] sm:$0xff]
          %v361 = vld [vmem:[%s312 + $0x8] sm:$0xff]
          %v362 = vld [vmem:[%s312 + $0x10] sm:$0xff]
          %v363 = vld [vmem:[#allocation11] sm:$0xff]
          %v364 = vld [vmem:[#allocation11 + $0x8] sm:$0xff]
          %v365 = vld [vmem:[#allocation11 + $0x10] sm:$0xff]
          %v366 = vld [vmem:[#allocation11 + $0x18] sm:$0xff]
          %v367 = vld [vmem:[#allocation11 + $0x20] sm:$0xff]
          %v368 = vld [vmem:[#allocation11 + $0x28] sm:$0xff]
          %v369 = vld [vmem:[#allocation11 + $0x30] sm:$0xff]
          %v370 = vld [vmem:[#allocation11 + $0x38] sm:$0xff]
          %v371 = vld [vmem:[#allocation11 + $0x40] sm:$0xff]
          %v372 = vld [vmem:[#allocation11 + $0x48] sm:$0xff]
          %v373 = vld [vmem:[#allocation11 + $0x50] sm:$0xff]
          %v374 = vld [vmem:[#allocation11 + $0x58] sm:$0xff]
          %v375 = vld [vmem:[#allocation11 + $0x60] sm:$0xff]
          %v376 = vld [vmem:[#allocation11 + $0x68] sm:$0xff]
          %v377 = vld [vmem:[#allocation11 + $0x70] sm:$0xff]
          %v378 = vld [vmem:[#allocation11 + $0x78] sm:$0xff]
          %v379 = vld [vmem:[#allocation11 + $0x80] sm:$0xff]
          %v380 = vld [vmem:[#allocation11 + $0x88] sm:$0xff]
          %v381 = vld [vmem:[#allocation11 + $0x90] sm:$0xff]
          %v382 = vld [vmem:[#allocation11 + $0x98] sm:$0xff]
          %v383 = vld [vmem:[#allocation11 + $0xa0] sm:$0xff]
          %v384 = vld [vmem:[#allocation11 + $0xa8] sm:$0xff]
          %v385 = vld [vmem:[#allocation11 + $0xb0] sm:$0xff]
          %v386 = vld [vmem:[#allocation11 + $0xb8] sm:$0xff]
          %v387 = vld [vmem:[#allocation11 + $0xc0] sm:$0xff]
          %v388 = vld [vmem:[#allocation11 + $0xc8] sm:$0xff]
          %v389 = vld [vmem:[#allocation11 + $0xd0] sm:$0xff]
          %v390 = vld [vmem:[#allocation11 + $0xd8] sm:$0xff]
          %v391 = vld [vmem:[#allocation11 + $0xe0] sm:$0xff]
          %v392 = vld [vmem:[#allocation11 + $0xe8] sm:$0xff]
          %v393 = vld [vmem:[#allocation11 + $0xf0] sm:$0xff]
          %v394 = vld [vmem:[#allocation11 + $0xf8] sm:$0xff]
          %v395 = vld [vmem:[#allocation11 + $0x100] sm:$0xff]
          %v396 = vld [vmem:[#allocation11 + $0x108] sm:$0xff]
          %v397 = vld [vmem:[#allocation11 + $0x110] sm:$0xff]
          %v398 = vld [vmem:[#allocation11 + $0x118] sm:$0xff]
          %v399 = vld [vmem:[#allocation11 + $0x120] sm:$0xff]
          %v400 = vld [vmem:[#allocation11 + $0x128] sm:$0xff]
          %v401 = vld [vmem:[#allocation11 + $0x130] sm:$0xff]
          %v402 = vld [vmem:[#allocation11 + $0x138] sm:$0xff]
          %v403 = vld [vmem:[#allocation11 + $0x140] sm:$0xff]
          %v404 = vld [vmem:[#allocation11 + $0x148] sm:$0xff]
          %v405 = vld [vmem:[#allocation11 + $0x150] sm:$0xff]
          %v406 = vld [vmem:[#allocation11 + $0x158] sm:$0xff]
          %v407 = vld [vmem:[#allocation11 + $0x160] sm:$0xff]
          %v408 = vld [vmem:[#allocation11 + $0x168] sm:$0xff]
          %v409 = vld [vmem:[#allocation11 + $0x170] sm:$0xff]
          %v410 = vld [vmem:[#allocation11 + $0x178] sm:$0xff]
          %v411 = vld [vmem:[#allocation11 + $0x180] sm:$0xff]
          %v412 = vld [vmem:[#allocation11 + $0x188] sm:$0xff]
          %v413 = vld [vmem:[#allocation11 + $0x190] sm:$0xff]
          %v414 = vld [vmem:[#allocation11 + $0x198] sm:$0xff]
          %v415 = vld [vmem:[#allocation11 + $0x1a0] sm:$0xff]
          %v416 = vld [vmem:[#allocation11 + $0x1a8] sm:$0xff]
          %v417 = vld [vmem:[#allocation11 + $0x1b0] sm:$0xff]
          %v418 = vld [vmem:[#allocation11 + $0x1b8] sm:$0xff]
          %v419 = vld [vmem:[#allocation11 + $0x1c0] sm:$0xff]
          %v420 = vld [vmem:[#allocation11 + $0x1c8] sm:$0xff]
          %v421 = vld [vmem:[#allocation11 + $0x1d0] sm:$0xff]
          %v422 = vld [vmem:[#allocation11 + $0x1d8] sm:$0xff]
          %v423 = vld [vmem:[#allocation11 + $0x1e0] sm:$0xff]
          %v424 = vld [vmem:[#allocation11 + $0x1e8] sm:$0xff]
          %v425 = vld [vmem:[#allocation11 + $0x1f0] sm:$0xff]
          %v426 = vld [vmem:[#allocation11 + $0x1f8] sm:$0xff]
          %v427 = vld [vmem:[%s4] sm:$0xf]
          %v429 = vlaneseq
          %v430 = vshrl.u32 %v429, 7
          %v431 = vsub.s32 0, %v430
          %v432 = vrot.slane %v427, %v431
          %v433 = vlaneseq
          %v434 = vshrl.u32 %v433, 7
          %v435 = vsub.s32 1, %v434
          %v436 = vrot.slane %v427, %v435
          %v437 = vlaneseq
          %v438 = vshrl.u32 %v437, 7
          %v439 = vsub.s32 2, %v438
          %v440 = vrot.slane %v427, %v439
          %v441 = vlaneseq
          %v442 = vshrl.u32 %v441, 7
          %v443 = vsub.s32 3, %v442
          %v444 = vrot.slane %v427, %v443
          %v452 = vunpack.c.l.b16 %v360
          %v453 = vunpack.c.h.b16 %v360
          %v454 = vunpack.c.l.b16 %v361
          %v455 = vunpack.c.h.b16 %v361
          %v456 = vunpack.c.l.b16 %v362
          %v457 = vunpack.c.h.b16 %v362
          %v458 = vpack.c.b16 %v454, %v452
          %v459 = vpack.c.b16 %v455, %v453
          %v460 = vpack.c.b16 %v456, %v456
          %v461 = vpack.c.b16 %v457, %v457
          %v530 = vunpack.c.l.b16 %v363
          %v531 = vunpack.c.h.b16 %v363
          %v532 = vunpack.c.l.b16 %v364
          %v533 = vunpack.c.h.b16 %v364
          %v534 = vunpack.c.l.b16 %v365
          %v535 = vunpack.c.h.b16 %v365
          %v536 = vunpack.c.l.b16 %v366
          %v537 = vunpack.c.h.b16 %v366
          %v538 = vunpack.c.l.b16 %v367
          %v539 = vunpack.c.h.b16 %v367
          %v540 = vunpack.c.l.b16 %v368
          %v541 = vunpack.c.h.b16 %v368
          %v542 = vunpack.c.l.b16 %v369
          %v543 = vunpack.c.h.b16 %v369
          %v544 = vunpack.c.l.b16 %v370
          %v545 = vunpack.c.h.b16 %v370
          %v546 = vunpack.c.l.b16 %v371
          %v547 = vunpack.c.h.b16 %v371
          %v548 = vunpack.c.l.b16 %v372
          %v549 = vunpack.c.h.b16 %v372
          %v550 = vunpack.c.l.b16 %v373
          %v551 = vunpack.c.h.b16 %v373
          %v552 = vunpack.c.l.b16 %v374
          %v553 = vunpack.c.h.b16 %v374
          %v554 = vunpack.c.l.b16 %v375
          %v555 = vunpack.c.h.b16 %v375
          %v556 = vunpack.c.l.b16 %v376
          %v557 = vunpack.c.h.b16 %v376
          %v558 = vunpack.c.l.b16 %v377
          %v559 = vunpack.c.h.b16 %v377
          %v560 = vunpack.c.l.b16 %v378
          %v561 = vunpack.c.h.b16 %v378
          %v562 = vunpack.c.l.b16 %v379
          %v563 = vunpack.c.h.b16 %v379
          %v564 = vunpack.c.l.b16 %v380
          %v565 = vunpack.c.h.b16 %v380
          %v566 = vunpack.c.l.b16 %v381
          %v567 = vunpack.c.h.b16 %v381
          %v568 = vunpack.c.l.b16 %v382
          %v569 = vunpack.c.h.b16 %v382
          %v570 = vunpack.c.l.b16 %v383
          %v571 = vunpack.c.h.b16 %v383
          %v572 = vunpack.c.l.b16 %v384
          %v573 = vunpack.c.h.b16 %v384
          %v574 = vunpack.c.l.b16 %v385
          %v575 = vunpack.c.h.b16 %v385
          %v576 = vunpack.c.l.b16 %v386
          %v577 = vunpack.c.h.b16 %v386
          %v578 = vunpack.c.l.b16 %v387
          %v579 = vunpack.c.h.b16 %v387
          %v580 = vunpack.c.l.b16 %v388
          %v581 = vunpack.c.h.b16 %v388
          %v582 = vunpack.c.l.b16 %v389
          %v583 = vunpack.c.h.b16 %v389
          %v584 = vunpack.c.l.b16 %v390
          %v585 = vunpack.c.h.b16 %v390
          %v586 = vunpack.c.l.b16 %v391
          %v587 = vunpack.c.h.b16 %v391
          %v588 = vunpack.c.l.b16 %v392
          %v589 = vunpack.c.h.b16 %v392
          %v590 = vunpack.c.l.b16 %v393
          %v591 = vunpack.c.h.b16 %v393
          %v592 = vunpack.c.l.b16 %v394
          %v593 = vunpack.c.h.b16 %v394
          %v594 = vunpack.c.l.b16 %v395
          %v595 = vunpack.c.h.b16 %v395
          %v596 = vunpack.c.l.b16 %v396
          %v597 = vunpack.c.h.b16 %v396
          %v598 = vunpack.c.l.b16 %v397
          %v599 = vunpack.c.h.b16 %v397
          %v600 = vunpack.c.l.b16 %v398
          %v601 = vunpack.c.h.b16 %v398
          %v602 = vunpack.c.l.b16 %v399
          %v603 = vunpack.c.h.b16 %v399
          %v604 = vunpack.c.l.b16 %v400
          %v605 = vunpack.c.h.b16 %v400
          %v606 = vunpack.c.l.b16 %v401
          %v607 = vunpack.c.h.b16 %v401
          %v608 = vunpack.c.l.b16 %v402
          %v609 = vunpack.c.h.b16 %v402
          %v610 = vunpack.c.l.b16 %v403
          %v611 = vunpack.c.h.b16 %v403
          %v612 = vunpack.c.l.b16 %v404
          %v613 = vunpack.c.h.b16 %v404
          %v614 = vunpack.c.l.b16 %v405
          %v615 = vunpack.c.h.b16 %v405
          %v616 = vunpack.c.l.b16 %v406
          %v617 = vunpack.c.h.b16 %v406
          %v618 = vunpack.c.l.b16 %v407
          %v619 = vunpack.c.h.b16 %v407
          %v620 = vunpack.c.l.b16 %v408
          %v621 = vunpack.c.h.b16 %v408
          %v622 = vunpack.c.l.b16 %v409
          %v623 = vunpack.c.h.b16 %v409
          %v624 = vunpack.c.l.b16 %v410
          %v625 = vunpack.c.h.b16 %v410
          %v626 = vunpack.c.l.b16 %v411
          %v627 = vunpack.c.h.b16 %v411
          %v628 = vunpack.c.l.b16 %v412
          %v629 = vunpack.c.h.b16 %v412
          %v630 = vunpack.c.l.b16 %v413
          %v631 = vunpack.c.h.b16 %v413
          %v632 = vunpack.c.l.b16 %v414
          %v633 = vunpack.c.h.b16 %v414
          %v634 = vunpack.c.l.b16 %v415
          %v635 = vunpack.c.h.b16 %v415
          %v636 = vunpack.c.l.b16 %v416
          %v637 = vunpack.c.h.b16 %v416
          %v638 = vunpack.c.l.b16 %v417
          %v639 = vunpack.c.h.b16 %v417
          %v640 = vunpack.c.l.b16 %v418
          %v641 = vunpack.c.h.b16 %v418
          %v642 = vunpack.c.l.b16 %v419
          %v643 = vunpack.c.h.b16 %v419
          %v644 = vunpack.c.l.b16 %v420
          %v645 = vunpack.c.h.b16 %v420
          %v646 = vunpack.c.l.b16 %v421
          %v647 = vunpack.c.h.b16 %v421
          %v648 = vunpack.c.l.b16 %v422
          %v649 = vunpack.c.h.b16 %v422
          %v650 = vunpack.c.l.b16 %v423
          %v651 = vunpack.c.h.b16 %v423
          %v652 = vunpack.c.l.b16 %v424
          %v653 = vunpack.c.h.b16 %v424
          %v654 = vunpack.c.l.b16 %v425
          %v655 = vunpack.c.h.b16 %v425
          %v656 = vunpack.c.l.b16 %v426
          %v657 = vunpack.c.h.b16 %v426
          %v658 = vpack.c.b16 %v534, %v530
          %v659 = vpack.c.b16 %v535, %v531
          %v660 = vpack.c.b16 %v536, %v532
          %v661 = vpack.c.b16 %v537, %v533
          %v662 = vpack.c.b16 %v542, %v538
          %v663 = vpack.c.b16 %v543, %v539
          %v664 = vpack.c.b16 %v544, %v540
          %v665 = vpack.c.b16 %v545, %v541
          %v666 = vpack.c.b16 %v550, %v546
          %v667 = vpack.c.b16 %v551, %v547
          %v668 = vpack.c.b16 %v552, %v548
          %v669 = vpack.c.b16 %v553, %v549
          %v670 = vpack.c.b16 %v558, %v554
          %v671 = vpack.c.b16 %v559, %v555
          %v672 = vpack.c.b16 %v560, %v556
          %v673 = vpack.c.b16 %v561, %v557
          %v674 = vpack.c.b16 %v566, %v562
          %v675 = vpack.c.b16 %v567, %v563
          %v676 = vpack.c.b16 %v568, %v564
          %v677 = vpack.c.b16 %v569, %v565
          %v678 = vpack.c.b16 %v574, %v570
          %v679 = vpack.c.b16 %v575, %v571
          %v680 = vpack.c.b16 %v576, %v572
          %v681 = vpack.c.b16 %v577, %v573
          %v682 = vpack.c.b16 %v582, %v578
          %v683 = vpack.c.b16 %v583, %v579
          %v684 = vpack.c.b16 %v584, %v580
          %v685 = vpack.c.b16 %v585, %v581
          %v686 = vpack.c.b16 %v590, %v586
          %v687 = vpack.c.b16 %v591, %v587
          %v688 = vpack.c.b16 %v592, %v588
          %v689 = vpack.c.b16 %v593, %v589
          %v690 = vpack.c.b16 %v598, %v594
          %v691 = vpack.c.b16 %v599, %v595
          %v692 = vpack.c.b16 %v600, %v596
          %v693 = vpack.c.b16 %v601, %v597
          %v694 = vpack.c.b16 %v606, %v602
          %v695 = vpack.c.b16 %v607, %v603
          %v696 = vpack.c.b16 %v608, %v604
          %v697 = vpack.c.b16 %v609, %v605
          %v698 = vpack.c.b16 %v614, %v610
          %v699 = vpack.c.b16 %v615, %v611
          %v700 = vpack.c.b16 %v616, %v612
          %v701 = vpack.c.b16 %v617, %v613
          %v702 = vpack.c.b16 %v622, %v618
          %v703 = vpack.c.b16 %v623, %v619
          %v704 = vpack.c.b16 %v624, %v620
          %v705 = vpack.c.b16 %v625, %v621
          %v706 = vpack.c.b16 %v630, %v626
          %v707 = vpack.c.b16 %v631, %v627
          %v708 = vpack.c.b16 %v632, %v628
          %v709 = vpack.c.b16 %v633, %v629
          %v710 = vpack.c.b16 %v638, %v634
          %v711 = vpack.c.b16 %v639, %v635
          %v712 = vpack.c.b16 %v640, %v636
          %v713 = vpack.c.b16 %v641, %v637
          %v714 = vpack.c.b16 %v646, %v642
          %v715 = vpack.c.b16 %v647, %v643
          %v716 = vpack.c.b16 %v648, %v644
          %v717 = vpack.c.b16 %v649, %v645
          %v718 = vpack.c.b16 %v654, %v650
          %v719 = vpack.c.b16 %v655, %v651
          %v720 = vpack.c.b16 %v656, %v652
          %v721 = vpack.c.b16 %v657, %v653
          %786 = vmatprep.subr.bf16.mxu0 %v687
          %787 = vmatpush1.bf16.msra.mxu0 %v686
          %788 = vmatprep.subr.bf16.mxu0 %v683
          %789 = vmatpush1.bf16.msra.mxu0 %v682
          %790 = vmatprep.subr.bf16.mxu0 %v679
          %791 = vmatpush1.bf16.msra.mxu0 %v678
          %792 = vmatprep.subr.bf16.mxu0 %v675
          %793 = vmatpush1.bf16.msra.mxu0 %v674
          %794 = vmatprep.subr.bf16.mxu0 %v671
          %795 = vmatpush1.bf16.msra.mxu0 %v670
          %796 = vmatprep.subr.bf16.mxu0 %v667
          %797 = vmatpush1.bf16.msra.mxu0 %v666
          %798 = vmatprep.subr.bf16.mxu0 %v663
          %799 = vmatpush1.bf16.msra.mxu0 %v662
          %800 = vmatprep.subr.bf16.mxu0 %v659
          %801 = vmatpush1.bf16.msra.mxu0 %v658
          %802 = vmatprep.subr.bf16.mxu0 %v719
          %803 = vmatpush2.bf16.msra.mxu0 %v718
          %804 = vmatprep.subr.bf16.mxu0 %v715
          %805 = vmatpush2.bf16.msra.mxu0 %v714
          %806 = vmatprep.subr.bf16.mxu0 %v711
          %807 = vmatpush2.bf16.msra.mxu0 %v710
          %808 = vmatprep.subr.bf16.mxu0 %v707
          %809 = vmatpush2.bf16.msra.mxu0 %v706
          %810 = vmatprep.subr.bf16.mxu0 %v703
          %811 = vmatpush2.bf16.msra.mxu0 %v702
          %812 = vmatprep.subr.bf16.mxu0 %v699
          %813 = vmatpush2.bf16.msra.mxu0 %v698
          %814 = vmatprep.subr.bf16.mxu0 %v695
          %815 = vmatpush2.bf16.msra.mxu0 %v694
          %816 = vmatprep.subr.bf16.mxu0 %v691
          %817 = vmatpush2.bf16.msra.mxu0 %v690
          %818 = vmatprep.mubr.bf16.mxu0 %v459
          %819 = vmatmul.mubr.bf16.gmra.mxu0 %v458
          %v820 = vpop.f32.mrf.mxu0
          %v821 = vadd.f32 %v432, %v820
          %v822 = vpop.f32.mrf.mxu0
          %v823 = vadd.f32 %v436, %v822
          %v824 = vpop.f32.mrf.mxu0
          %v825 = vadd.f32 %v432, %v824
          %v826 = vpop.f32.mrf.mxu0
          %v827 = vadd.f32 %v436, %v826
          %828 = vmatprep.mubr.bf16.mxu0 %v461
          %829 = vmatmul.mubr.bf16.gmra.mxu0 %v460
          %v830 = vpop.f32.mrf.mxu0
          %v831 = vadd.f32 %v432, %v830
          %v832 = vpop.f32.mrf.mxu0
          %v833 = vadd.f32 %v436, %v832
          %v834 = vpop.f32.mrf.mxu0
          %v835 = vpop.f32.mrf.mxu0
          %836 = vdwg.mxu0
          %837 = vmatprep.subr.bf16.mxu0 %v689
          %838 = vmatpush1.bf16.msra.mxu0 %v688
          %839 = vmatprep.subr.bf16.mxu0 %v685
          %840 = vmatpush1.bf16.msra.mxu0 %v684
          %841 = vmatprep.subr.bf16.mxu0 %v681
          %842 = vmatpush1.bf16.msra.mxu0 %v680
          %843 = vmatprep.subr.bf16.mxu0 %v677
          %844 = vmatpush1.bf16.msra.mxu0 %v676
          %845 = vmatprep.subr.bf16.mxu0 %v673
          %846 = vmatpush1.bf16.msra.mxu0 %v672
          %847 = vmatprep.subr.bf16.mxu0 %v669
          %848 = vmatpush1.bf16.msra.mxu0 %v668
          %849 = vmatprep.subr.bf16.mxu0 %v665
          %850 = vmatpush1.bf16.msra.mxu0 %v664
          %851 = vmatprep.subr.bf16.mxu0 %v661
          %852 = vmatpush1.bf16.msra.mxu0 %v660
          %853 = vmatprep.subr.bf16.mxu0 %v721
          %854 = vmatpush2.bf16.msra.mxu0 %v720
          %855 = vmatprep.subr.bf16.mxu0 %v717
          %856 = vmatpush2.bf16.msra.mxu0 %v716
          %857 = vmatprep.subr.bf16.mxu0 %v713
          %858 = vmatpush2.bf16.msra.mxu0 %v712
          %859 = vmatprep.subr.bf16.mxu0 %v709
          %860 = vmatpush2.bf16.msra.mxu0 %v708
          %861 = vmatprep.subr.bf16.mxu0 %v705
          %862 = vmatpush2.bf16.msra.mxu0 %v704
          %863 = vmatprep.subr.bf16.mxu0 %v701
          %864 = vmatpush2.bf16.msra.mxu0 %v700
          %865 = vmatprep.subr.bf16.mxu0 %v697
          %866 = vmatpush2.bf16.msra.mxu0 %v696
          %867 = vmatprep.subr.bf16.mxu0 %v693
          %868 = vmatpush2.bf16.msra.mxu0 %v692
          %869 = vmatprep.mubr.bf16.mxu0 %v459
          %870 = vmatmul.mubr.bf16.gmra.mxu0 %v458
          %v871 = vpop.f32.mrf.mxu0
          %v872 = vadd.f32 %v440, %v871
          %v873 = vpop.f32.mrf.mxu0
          %v874 = vadd.f32 %v444, %v873
          %v875 = vpop.f32.mrf.mxu0
          %v876 = vadd.f32 %v440, %v875
          %v877 = vpop.f32.mrf.mxu0
          %v878 = vadd.f32 %v444, %v877
          %879 = vmatprep.mubr.bf16.mxu0 %v461
          %880 = vmatmul.mubr.bf16.gmra.mxu0 %v460
          %v881 = vpop.f32.mrf.mxu0
          %v882 = vadd.f32 %v440, %v881
          %v883 = vpop.f32.mrf.mxu0
          %v884 = vadd.f32 %v444, %v883
          %v885 = vpop.f32.mrf.mxu0
          %v886 = vpop.f32.mrf.mxu0
          %887 = vdwg.mxu0
          %888 = vxpose.xlu0.b32.start [1/16] %v821, 128
          %889 = vxpose.xlu0.b32.cont [2/16] %v825, 128
          %890 = vxpose.xlu0.b32.cont [3/16] %v831, 128
          %891 = vxpose.xlu0.b32.cont [4/16] 0.0, 128
          %892 = vxpose.xlu0.b32.cont [5/16] 0.0, 128
          %893 = vxpose.xlu0.b32.cont [6/16] 0.0, 128
          %894 = vxpose.xlu0.b32.cont [7/16] 0.0, 128
          %895 = vxpose.xlu0.b32.cont [8/16] 0.0, 128
          %896 = vxpose.xlu0.b32.cont [9/16] 0.0, 128
          %897 = vxpose.xlu0.b32.cont [10/16] 0.0, 128
          %898 = vxpose.xlu0.b32.cont [11/16] 0.0, 128
          %899 = vxpose.xlu0.b32.cont [12/16] 0.0, 128
          %900 = vxpose.xlu0.b32.cont [13/16] 0.0, 128
          %901 = vxpose.xlu0.b32.cont [14/16] 0.0, 128
          %902 = vxpose.xlu0.b32.cont [15/16] 0.0, 128
          %903 = vxpose.xlu0.b32.end [16/16] 0.0, 128
          %v904 = vpop.trf.xlu0
          %v905 = vpop.trf.xlu0
          %v906 = vpop.trf.xlu0
          %v907 = vpop.trf.xlu0
          %v908 = vpop.trf.xlu0
          %v909 = vpop.trf.xlu0
          %v910 = vpop.trf.xlu0
          %v911 = vpop.trf.xlu0
          %v912 = vpop.trf.xlu0
          %v913 = vpop.trf.xlu0
          %v914 = vpop.trf.xlu0
          %v915 = vpop.trf.xlu0
          %v916 = vpop.trf.xlu0
          %v917 = vpop.trf.xlu0
          %v918 = vpop.trf.xlu0
          %v919 = vpop.trf.xlu0
          %920 = vxpose.xlu0.b32.start [1/16] %v823, 128
          %921 = vxpose.xlu0.b32.cont [2/16] %v827, 128
          %922 = vxpose.xlu0.b32.cont [3/16] %v833, 128
          %923 = vxpose.xlu0.b32.cont [4/16] 0.0, 128
          %924 = vxpose.xlu0.b32.cont [5/16] 0.0, 128
          %925 = vxpose.xlu0.b32.cont [6/16] 0.0, 128
          %926 = vxpose.xlu0.b32.cont [7/16] 0.0, 128
          %927 = vxpose.xlu0.b32.cont [8/16] 0.0, 128
          %928 = vxpose.xlu0.b32.cont [9/16] 0.0, 128
          %929 = vxpose.xlu0.b32.cont [10/16] 0.0, 128
          %930 = vxpose.xlu0.b32.cont [11/16] 0.0, 128
          %931 = vxpose.xlu0.b32.cont [12/16] 0.0, 128
          %932 = vxpose.xlu0.b32.cont [13/16] 0.0, 128
          %933 = vxpose.xlu0.b32.cont [14/16] 0.0, 128
          %934 = vxpose.xlu0.b32.cont [15/16] 0.0, 128
          %935 = vxpose.xlu0.b32.end [16/16] 0.0, 128
          %v936 = vpop.trf.xlu0
          %v937 = vpop.trf.xlu0
          %v938 = vpop.trf.xlu0
          %v939 = vpop.trf.xlu0
          %v940 = vpop.trf.xlu0
          %v941 = vpop.trf.xlu0
          %v942 = vpop.trf.xlu0
          %v943 = vpop.trf.xlu0
          %v944 = vpop.trf.xlu0
          %v945 = vpop.trf.xlu0
          %v946 = vpop.trf.xlu0
          %v947 = vpop.trf.xlu0
          %v948 = vpop.trf.xlu0
          %v949 = vpop.trf.xlu0
          %v950 = vpop.trf.xlu0
          %v951 = vpop.trf.xlu0
          %v952 = vpack.c.bf16 %v905, %v904
          %v953 = vpack.c.bf16 %v907, %v906
          %v954 = vpack.c.bf16 %v909, %v908
          %v955 = vpack.c.bf16 %v911, %v910
          %v956 = vpack.c.bf16 %v913, %v912
          %v957 = vpack.c.bf16 %v915, %v914
          %v958 = vpack.c.bf16 %v917, %v916
          %v959 = vpack.c.bf16 %v919, %v918
          %v960 = vpack.c.bf16 %v937, %v936
          %v961 = vpack.c.bf16 %v939, %v938
          %v962 = vpack.c.bf16 %v941, %v940
          %v963 = vpack.c.bf16 %v943, %v942
          %v964 = vpack.c.bf16 %v945, %v944
          %v965 = vpack.c.bf16 %v947, %v946
          %v966 = vpack.c.bf16 %v949, %v948
          %v967 = vpack.c.bf16 %v951, %v950
          %v984 = vunpack.c.l.b16 %v952
          %v985 = vunpack.c.h.b16 %v952
          %v986 = vunpack.c.l.b16 %v953
          %v987 = vunpack.c.h.b16 %v953
          %v988 = vunpack.c.l.b16 %v954
          %v989 = vunpack.c.h.b16 %v954
          %v990 = vunpack.c.l.b16 %v955
          %v991 = vunpack.c.h.b16 %v955
          %v992 = vunpack.c.l.b16 %v956
          %v993 = vunpack.c.h.b16 %v956
          %v994 = vunpack.c.l.b16 %v957
          %v995 = vunpack.c.h.b16 %v957
          %v996 = vunpack.c.l.b16 %v958
          %v997 = vunpack.c.h.b16 %v958
          %v998 = vunpack.c.l.b16 %v959
          %v999 = vunpack.c.h.b16 %v959
          %v1000 = vunpack.c.l.b16 %v960
          %v1001 = vunpack.c.h.b16 %v960
          %v1002 = vunpack.c.l.b16 %v961
          %v1003 = vunpack.c.h.b16 %v961
          %v1004 = vunpack.c.l.b16 %v962
          %v1005 = vunpack.c.h.b16 %v962
          %v1006 = vunpack.c.l.b16 %v963
          %v1007 = vunpack.c.h.b16 %v963
          %v1008 = vunpack.c.l.b16 %v964
          %v1009 = vunpack.c.h.b16 %v964
          %v1010 = vunpack.c.l.b16 %v965
          %v1011 = vunpack.c.h.b16 %v965
          %v1012 = vunpack.c.l.b16 %v966
          %v1013 = vunpack.c.h.b16 %v966
          %v1014 = vunpack.c.l.b16 %v967
          %v1015 = vunpack.c.h.b16 %v967
          %v1016 = vpack.c.b16 %v984, %v984
          %v1017 = vpack.c.b16 %v985, %v985
          %v1018 = vpack.c.b16 %v986, %v986
          %v1019 = vpack.c.b16 %v987, %v987
          %v1020 = vpack.c.b16 %v988, %v988
          %v1021 = vpack.c.b16 %v989, %v989
          %v1022 = vpack.c.b16 %v990, %v990
          %v1023 = vpack.c.b16 %v991, %v991
          %v1024 = vpack.c.b16 %v992, %v992
          %v1025 = vpack.c.b16 %v993, %v993
          %v1026 = vpack.c.b16 %v994, %v994
          %v1027 = vpack.c.b16 %v995, %v995
          %v1028 = vpack.c.b16 %v996, %v996
          %v1029 = vpack.c.b16 %v997, %v997
          %v1030 = vpack.c.b16 %v998, %v998
          %v1031 = vpack.c.b16 %v999, %v999
          %v1032 = vpack.c.b16 %v1000, %v1000
          %v1033 = vpack.c.b16 %v1001, %v1001
          %v1034 = vpack.c.b16 %v1002, %v1002
          %v1035 = vpack.c.b16 %v1003, %v1003
          %v1036 = vpack.c.b16 %v1004, %v1004
          %v1037 = vpack.c.b16 %v1005, %v1005
          %v1038 = vpack.c.b16 %v1006, %v1006
          %v1039 = vpack.c.b16 %v1007, %v1007
          %v1040 = vpack.c.b16 %v1008, %v1008
          %v1041 = vpack.c.b16 %v1009, %v1009
          %v1042 = vpack.c.b16 %v1010, %v1010
          %v1043 = vpack.c.b16 %v1011, %v1011
          %v1044 = vpack.c.b16 %v1012, %v1012
          %v1045 = vpack.c.b16 %v1013, %v1013
          %v1046 = vpack.c.b16 %v1014, %v1014
          %v1047 = vpack.c.b16 %v1015, %v1015
          %vm1080 = vcmask 191488
          %1081 = vst.msk [vmem:[#allocation2] sm:$0xf] %vm1080, %v1016
          %1082 = vst.msk [vmem:[#allocation2 + $0x4] sm:$0xf] %vm1080, %v1017
          %1083 = vst.msk [vmem:[#allocation2 + $0x8] sm:$0xf] %vm1080, %v1018
          %1084 = vst.msk [vmem:[#allocation2 + $0xc] sm:$0xf] %vm1080, %v1019
          %1085 = vst.msk [vmem:[#allocation2 + $0x10] sm:$0xf] %vm1080, %v1020
          %1086 = vst.msk [vmem:[#allocation2 + $0x14] sm:$0xf] %vm1080, %v1021
          %1087 = vst.msk [vmem:[#allocation2 + $0x18] sm:$0xf] %vm1080, %v1022
          %1088 = vst.msk [vmem:[#allocation2 + $0x1c] sm:$0xf] %vm1080, %v1023
          %1089 = vst.msk [vmem:[#allocation2 + $0x20] sm:$0xf] %vm1080, %v1024
          %1090 = vst.msk [vmem:[#allocation2 + $0x24] sm:$0xf] %vm1080, %v1025
          %1091 = vst.msk [vmem:[#allocation2 + $0x28] sm:$0xf] %vm1080, %v1026
          %1092 = vst.msk [vmem:[#allocation2 + $0x2c] sm:$0xf] %vm1080, %v1027
          %1093 = vst.msk [vmem:[#allocation2 + $0x30] sm:$0xf] %vm1080, %v1028
          %1094 = vst.msk [vmem:[#allocation2 + $0x34] sm:$0xf] %vm1080, %v1029
          %1095 = vst.msk [vmem:[#allocation2 + $0x38] sm:$0xf] %vm1080, %v1030
          %1096 = vst.msk [vmem:[#allocation2 + $0x3c] sm:$0xf] %vm1080, %v1031
          %1097 = vst.msk [vmem:[#allocation2 + $0x40] sm:$0xf] %vm1080, %v1032
          %1098 = vst.msk [vmem:[#allocation2 + $0x44] sm:$0xf] %vm1080, %v1033
          %1099 = vst.msk [vmem:[#allocation2 + $0x48] sm:$0xf] %vm1080, %v1034
          %1100 = vst.msk [vmem:[#allocation2 + $0x4c] sm:$0xf] %vm1080, %v1035
          %1101 = vst.msk [vmem:[#allocation2 + $0x50] sm:$0xf] %vm1080, %v1036
          %1102 = vst.msk [vmem:[#allocation2 + $0x54] sm:$0xf] %vm1080, %v1037
          %1103 = vst.msk [vmem:[#allocation2 + $0x58] sm:$0xf] %vm1080, %v1038
          %1104 = vst.msk [vmem:[#allocation2 + $0x5c] sm:$0xf] %vm1080, %v1039
          %1105 = vst.msk [vmem:[#allocation2 + $0x60] sm:$0xf] %vm1080, %v1040
          %1106 = vst.msk [vmem:[#allocation2 + $0x64] sm:$0xf] %vm1080, %v1041
          %1107 = vst.msk [vmem:[#allocation2 + $0x68] sm:$0xf] %vm1080, %v1042
          %1108 = vst.msk [vmem:[#allocation2 + $0x6c] sm:$0xf] %vm1080, %v1043
          %1109 = vst.msk [vmem:[#allocation2 + $0x70] sm:$0xf] %vm1080, %v1044
          %1110 = vst.msk [vmem:[#allocation2 + $0x74] sm:$0xf] %vm1080, %v1045
          %1111 = vst.msk [vmem:[#allocation2 + $0x78] sm:$0xf] %vm1080, %v1046
          %1112 = vst.msk [vmem:[#allocation2 + $0x7c] sm:$0xf] %vm1080, %v1047
          %v1113 = vpack.c.bf16 %v876, %v872
          %v1114 = vpack.c.bf16 %v878, %v874
          %v1115 = vpack.c.bf16 %v882, %v882
          %v1116 = vpack.c.bf16 %v884, %v884
          %v1121 = vunpack.c.l.b16 %v1113
          %v1122 = vunpack.c.l.b16 %v1114
          %v1123 = vunpack.c.h.b16 %v1113
          %v1124 = vunpack.c.h.b16 %v1114
          %v1125 = vunpack.c.l.b16 %v1115
          %v1126 = vunpack.c.l.b16 %v1116
          %v1127 = vpack.c.b16 %v1122, %v1121
          %v1128 = vpack.c.b16 %v1124, %v1123
          %v1129 = vpack.c.b16 %v1126, %v1125
          %1133 = vst [vmem:[#allocation3] sm:$0xff] %v1127
          %1134 = vst [vmem:[#allocation3 + $0x8] sm:$0xff] %v1128
          %1135 = vst [vmem:[#allocation3 + $0x10] sm:$0xff] %v1129
        $region68: #{tpu_custom_call.1} parent=47 // pred_fallthru
          _
        %s1136 = smul.u32 %s31, 8
        %s1137 = sshra.s32 %s1136, 3
        %s1138 = sand.u32 %s1136, 7
        %s1139 = smul.u32 %s1137, 2
        %s1140 = smul.addr %s1139, 4
        %s1141 = scalar_lea.vmem %s312, %s1140 [#allocation6]
        %v1142 = vld [vmem:[%s1141] sm:$0xff]
        %v1143 = vld [vmem:[#allocation9] sm:$0xff]
        %v1144 = vld [vmem:[#allocation9 + $0x8] sm:$0xff]
        %v1145 = vld [vmem:[#allocation9 + $0x10] sm:$0xff]
        %v1146 = vld [vmem:[#allocation9 + $0x18] sm:$0xff]
        %v1147 = vld [vmem:[#allocation9 + $0x20] sm:$0xff]
        %v1148 = vld [vmem:[#allocation9 + $0x28] sm:$0xff]
        %v1149 = vld [vmem:[#allocation9 + $0x30] sm:$0xff]
        %v1150 = vld [vmem:[#allocation9 + $0x38] sm:$0xff]
        %v1151 = vld [vmem:[#allocation9 + $0x40] sm:$0xff]
        %v1152 = vld [vmem:[#allocation9 + $0x48] sm:$0xff]
        %v1153 = vld [vmem:[#allocation9 + $0x50] sm:$0xff]
        %v1154 = vld [vmem:[#allocation9 + $0x58] sm:$0xff]
        %v1155 = vld [vmem:[#allocation9 + $0x60] sm:$0xff]
        %v1156 = vld [vmem:[#allocation9 + $0x68] sm:$0xff]
        %v1157 = vld [vmem:[#allocation9 + $0x70] sm:$0xff]
        %v1158 = vld [vmem:[#allocation9 + $0x78] sm:$0xff]
        %v1159 = vld [vmem:[#allocation9 + $0x80] sm:$0xff]
        %v1160 = vld [vmem:[#allocation9 + $0x88] sm:$0xff]
        %v1161 = vld [vmem:[#allocation9 + $0x90] sm:$0xff]
        %v1162 = vld [vmem:[#allocation9 + $0x98] sm:$0xff]
        %v1163 = vld [vmem:[#allocation9 + $0xa0] sm:$0xff]
        %v1164 = vld [vmem:[#allocation9 + $0xa8] sm:$0xff]
        %v1165 = vld [vmem:[#allocation9 + $0xb0] sm:$0xff]
        %v1166 = vld [vmem:[#allocation9 + $0xb8] sm:$0xff]
        %v1167 = vld [vmem:[#allocation9 + $0xc0] sm:$0xff]
        %v1168 = vld [vmem:[#allocation9 + $0xc8] sm:$0xff]
        %v1169 = vld [vmem:[#allocation9 + $0xd0] sm:$0xff]
        %v1170 = vld [vmem:[#allocation9 + $0xd8] sm:$0xff]
        %v1171 = vld [vmem:[#allocation9 + $0xe0] sm:$0xff]
        %v1172 = vld [vmem:[#allocation9 + $0xe8] sm:$0xff]
        %v1173 = vld [vmem:[#allocation9 + $0xf0] sm:$0xff]
        %v1174 = vld [vmem:[#allocation9 + $0xf8] sm:$0xff]
        %v1175 = vld [vmem:[%s2] sm:$0x3]
        %v1177 = vlaneseq
        %v1178 = vshrl.u32 %v1177, 7
        %v1179 = vsub.s32 0, %v1178
        %v1180 = vrot.slane %v1175, %v1179
        %v1181 = vlaneseq
        %v1182 = vshrl.u32 %v1181, 7
        %v1183 = vsub.s32 1, %v1182
        %v1184 = vrot.slane %v1175, %v1183
        %v1188 = vunpack.c.l.b16 %v1142
        %v1189 = vunpack.c.h.b16 %v1142
        %v1190 = vpack.c.b16 %v1188, %v1188
        %v1191 = vpack.c.b16 %v1189, %v1189
        %v1226 = vunpack.c.l.b16 %v1143
        %v1227 = vunpack.c.h.b16 %v1143
        %v1228 = vunpack.c.l.b16 %v1144
        %v1229 = vunpack.c.h.b16 %v1144
        %v1230 = vunpack.c.l.b16 %v1145
        %v1231 = vunpack.c.h.b16 %v1145
        %v1232 = vunpack.c.l.b16 %v1146
        %v1233 = vunpack.c.h.b16 %v1146
        %v1234 = vunpack.c.l.b16 %v1147
        %v1235 = vunpack.c.h.b16 %v1147
        %v1236 = vunpack.c.l.b16 %v1148
        %v1237 = vunpack.c.h.b16 %v1148
        %v1238 = vunpack.c.l.b16 %v1149
        %v1239 = vunpack.c.h.b16 %v1149
        %v1240 = vunpack.c.l.b16 %v1150
        %v1241 = vunpack.c.h.b16 %v1150
        %v1242 = vunpack.c.l.b16 %v1151
        %v1243 = vunpack.c.h.b16 %v1151
        %v1244 = vunpack.c.l.b16 %v1152
        %v1245 = vunpack.c.h.b16 %v1152
        %v1246 = vunpack.c.l.b16 %v1153
        %v1247 = vunpack.c.h.b16 %v1153
        %v1248 = vunpack.c.l.b16 %v1154
        %v1249 = vunpack.c.h.b16 %v1154
        %v1250 = vunpack.c.l.b16 %v1155
        %v1251 = vunpack.c.h.b16 %v1155
        %v1252 = vunpack.c.l.b16 %v1156
        %v1253 = vunpack.c.h.b16 %v1156
        %v1254 = vunpack.c.l.b16 %v1157
        %v1255 = vunpack.c.h.b16 %v1157
        %v1256 = vunpack.c.l.b16 %v1158
        %v1257 = vunpack.c.h.b16 %v1158
        %v1258 = vunpack.c.l.b16 %v1159
        %v1259 = vunpack.c.h.b16 %v1159
        %v1260 = vunpack.c.l.b16 %v1160
        %v1261 = vunpack.c.h.b16 %v1160
        %v1262 = vunpack.c.l.b16 %v1161
        %v1263 = vunpack.c.h.b16 %v1161
        %v1264 = vunpack.c.l.b16 %v1162
        %v1265 = vunpack.c.h.b16 %v1162
        %v1266 = vunpack.c.l.b16 %v1163
        %v1267 = vunpack.c.h.b16 %v1163
        %v1268 = vunpack.c.l.b16 %v1164
        %v1269 = vunpack.c.h.b16 %v1164
        %v1270 = vunpack.c.l.b16 %v1165
        %v1271 = vunpack.c.h.b16 %v1165
        %v1272 = vunpack.c.l.b16 %v1166
        %v1273 = vunpack.c.h.b16 %v1166
        %v1274 = vunpack.c.l.b16 %v1167
        %v1275 = vunpack.c.h.b16 %v1167
        %v1276 = vunpack.c.l.b16 %v1168
        %v1277 = vunpack.c.h.b16 %v1168
        %v1278 = vunpack.c.l.b16 %v1169
        %v1279 = vunpack.c.h.b16 %v1169
        %v1280 = vunpack.c.l.b16 %v1170
        %v1281 = vunpack.c.h.b16 %v1170
        %v1282 = vunpack.c.l.b16 %v1171
        %v1283 = vunpack.c.h.b16 %v1171
        %v1284 = vunpack.c.l.b16 %v1172
        %v1285 = vunpack.c.h.b16 %v1172
        %v1286 = vunpack.c.l.b16 %v1173
        %v1287 = vunpack.c.h.b16 %v1173
        %v1288 = vunpack.c.l.b16 %v1174
        %v1289 = vunpack.c.h.b16 %v1174
        %v1290 = vpack.c.b16 %v1228, %v1226
        %v1291 = vpack.c.b16 %v1229, %v1227
        %v1292 = vpack.c.b16 %v1232, %v1230
        %v1293 = vpack.c.b16 %v1233, %v1231
        %v1294 = vpack.c.b16 %v1236, %v1234
        %v1295 = vpack.c.b16 %v1237, %v1235
        %v1296 = vpack.c.b16 %v1240, %v1238
        %v1297 = vpack.c.b16 %v1241, %v1239
        %v1298 = vpack.c.b16 %v1244, %v1242
        %v1299 = vpack.c.b16 %v1245, %v1243
        %v1300 = vpack.c.b16 %v1248, %v1246
        %v1301 = vpack.c.b16 %v1249, %v1247
        %v1302 = vpack.c.b16 %v1252, %v1250
        %v1303 = vpack.c.b16 %v1253, %v1251
        %v1304 = vpack.c.b16 %v1256, %v1254
        %v1305 = vpack.c.b16 %v1257, %v1255
        %v1306 = vpack.c.b16 %v1260, %v1258
        %v1307 = vpack.c.b16 %v1261, %v1259
        %v1308 = vpack.c.b16 %v1264, %v1262
        %v1309 = vpack.c.b16 %v1265, %v1263
        %v1310 = vpack.c.b16 %v1268, %v1266
        %v1311 = vpack.c.b16 %v1269, %v1267
        %v1312 = vpack.c.b16 %v1272, %v1270
        %v1313 = vpack.c.b16 %v1273, %v1271
        %v1314 = vpack.c.b16 %v1276, %v1274
        %v1315 = vpack.c.b16 %v1277, %v1275
        %v1316 = vpack.c.b16 %v1280, %v1278
        %v1317 = vpack.c.b16 %v1281, %v1279
        %v1318 = vpack.c.b16 %v1284, %v1282
        %v1319 = vpack.c.b16 %v1285, %v1283
        %v1320 = vpack.c.b16 %v1288, %v1286
        %v1321 = vpack.c.b16 %v1289, %v1287
        %1354 = vmatprep.subr.bf16.mxu0 %v1305
        %1355 = vmatpush1.bf16.msra.mxu0 %v1304
        %1356 = vmatprep.subr.bf16.mxu0 %v1303
        %1357 = vmatpush1.bf16.msra.mxu0 %v1302
        %1358 = vmatprep.subr.bf16.mxu0 %v1301
        %1359 = vmatpush1.bf16.msra.mxu0 %v1300
        %1360 = vmatprep.subr.bf16.mxu0 %v1299
        %1361 = vmatpush1.bf16.msra.mxu0 %v1298
        %1362 = vmatprep.subr.bf16.mxu0 %v1297
        %1363 = vmatpush1.bf16.msra.mxu0 %v1296
        %1364 = vmatprep.subr.bf16.mxu0 %v1295
        %1365 = vmatpush1.bf16.msra.mxu0 %v1294
        %1366 = vmatprep.subr.bf16.mxu0 %v1293
        %1367 = vmatpush1.bf16.msra.mxu0 %v1292
        %1368 = vmatprep.subr.bf16.mxu0 %v1291
        %1369 = vmatpush1.bf16.msra.mxu0 %v1290
        %1370 = vmatprep.subr.bf16.mxu0 %v1321
        %1371 = vmatpush2.bf16.msra.mxu0 %v1320
        %1372 = vmatprep.subr.bf16.mxu0 %v1319
        %1373 = vmatpush2.bf16.msra.mxu0 %v1318
        %1374 = vmatprep.subr.bf16.mxu0 %v1317
        %1375 = vmatpush2.bf16.msra.mxu0 %v1316
        %1376 = vmatprep.subr.bf16.mxu0 %v1315
        %1377 = vmatpush2.bf16.msra.mxu0 %v1314
        %1378 = vmatprep.subr.bf16.mxu0 %v1313
        %1379 = vmatpush2.bf16.msra.mxu0 %v1312
        %1380 = vmatprep.subr.bf16.mxu0 %v1311
        %1381 = vmatpush2.bf16.msra.mxu0 %v1310
        %1382 = vmatprep.subr.bf16.mxu0 %v1309
        %1383 = vmatpush2.bf16.msra.mxu0 %v1308
        %1384 = vmatprep.subr.bf16.mxu0 %v1307
        %1385 = vmatpush2.bf16.msra.mxu0 %v1306
        %1386 = vmatprep.mubr.bf16.mxu0 %v1191
        %1387 = vmatmul.mubr.bf16.gmra.mxu0 %v1190
        %v1388 = vpop.f32.mrf.mxu0
        %v1389 = vadd.f32 %v1180, %v1388
        %v1390 = vpop.f32.mrf.mxu0
        %v1391 = vadd.f32 %v1184, %v1390
        %v1392 = vpop.f32.mrf.mxu0
        %v1393 = vpop.f32.mrf.mxu0
        %1394 = vdwg.mxu0
        %v1395 = vpack.c.bf16 %v1389, %v1389
        %v1396 = vpack.c.bf16 %v1391, %v1391
        %v1399 = vunpack.c.l.b16 %v1395
        %v1400 = vunpack.c.l.b16 %v1396
        %v1401 = vpack.c.b16 %v1400, %v1399
        %1403 = vst [vmem:[#allocation4] sm:$0xff] %v1401
        %v1404 = vlaneseq
        %v1405 = vand.u32 %v1404, 127
        %vm1406 = vcmp.lt.s32.totalorder %v1405, 20
        %v1407 = vld [vmem:[#allocation4] sm:$0xf]
        %v1408 = vld [vmem:[#allocation2] sm:$0xf]
        %v1409 = vld [vmem:[#allocation2 + $0x4] sm:$0xf]
        %v1410 = vld [vmem:[#allocation2 + $0x8] sm:$0xf]
        %v1411 = vld [vmem:[#allocation2 + $0xc] sm:$0xf]
        %v1412 = vld [vmem:[#allocation2 + $0x10] sm:$0xf]
        %v1413 = vld [vmem:[#allocation2 + $0x14] sm:$0xf]
        %v1414 = vld [vmem:[#allocation2 + $0x18] sm:$0xf]
        %v1415 = vld [vmem:[#allocation2 + $0x1c] sm:$0xf]
        %v1424 = vunpack.c.l.b16 %v1408
        %v1425 = vunpack.c.l.b16 %v1409
        %v1426 = vunpack.c.l.b16 %v1410
        %v1427 = vunpack.c.l.b16 %v1411
        %v1428 = vunpack.c.l.b16 %v1412
        %v1429 = vunpack.c.l.b16 %v1413
        %v1430 = vunpack.c.l.b16 %v1414
        %v1431 = vunpack.c.l.b16 %v1415
        %v1432 = vpack.c.b16 %v1425, %v1424
        %v1433 = vpack.c.b16 %v1427, %v1426
        %v1434 = vpack.c.b16 %v1429, %v1428
        %v1435 = vpack.c.b16 %v1431, %v1430
        %vm1440 = vcmask 523264
        %v1442 = vsel %vm1440, %v1407, 0
        %1444 = vmatprep.subr.bf16.mxu0 0
        %1445 = vmatpush1.bf16.msra.mxu0 0
        %1446 = vmatprep.subr.bf16.mxu0 0
        %1447 = vmatpush1.bf16.msra.mxu0 0
        %1448 = vmatprep.subr.bf16.mxu0 0
        %1449 = vmatpush1.bf16.msra.mxu0 0
        %1450 = vmatprep.subr.bf16.mxu0 0
        %1451 = vmatpush1.bf16.msra.mxu0 0
        %1452 = vmatprep.subr.bf16.mxu0 0
        %1453 = vmatpush1.bf16.msra.mxu0 %v1435
        %1454 = vmatprep.subr.bf16.mxu0 0
        %1455 = vmatpush1.bf16.msra.mxu0 %v1434
        %1456 = vmatprep.subr.bf16.mxu0 0
        %1457 = vmatpush1.bf16.msra.mxu0 %v1433
        %1458 = vmatprep.subr.bf16.mxu0 0
        %1459 = vmatpush1.bf16.msra.mxu0 %v1432
        %1460 = vmatprep.subr.bf16.mxu0 0
        %1461 = vmatpush2.bf16.msra.mxu0 0
        %1462 = vmatprep.subr.bf16.mxu0 0
        %1463 = vmatpush2.bf16.msra.mxu0 0
        %1464 = vmatprep.subr.bf16.mxu0 0
        %1465 = vmatpush2.bf16.msra.mxu0 0
        %1466 = vmatprep.subr.bf16.mxu0 0
        %1467 = vmatpush2.bf16.msra.mxu0 0
        %1468 = vmatprep.subr.bf16.mxu0 0
        %1469 = vmatpush2.bf16.msra.mxu0 0
        %1470 = vmatprep.subr.bf16.mxu0 0
        %1471 = vmatpush2.bf16.msra.mxu0 0
        %1472 = vmatprep.subr.bf16.mxu0 0
        %1473 = vmatpush2.bf16.msra.mxu0 0
        %1474 = vmatprep.subr.bf16.mxu0 0
        %1475 = vmatpush2.bf16.msra.mxu0 0
        %1476 = vmatprep.mubr.bf16.mxu0 0
        %1477 = vmatmul.mubr.bf16.gmra.mxu0 %v1442
        %v1478 = vpop.f32.mrf.mxu0
        %v1479 = vadd.f32 0.0, %v1478
        %v1480 = vpop.f32.mrf.mxu0
        %v1481 = vpop.f32.mrf.mxu0
        %v1482 = vpop.f32.mrf.mxu0
        %1483 = vdwg.mxu0
        %v1484 = vsel %vm1406, %v1479, -1e+30
        %vm1485 = vcmask 195584
        %v1486 = vsel %vm1485, %v1484, -inf
        %1487 = vmax.xlane.f32.xlu0 %v1486
        %v1488 = vpop.xlane.xlu0 %1487
        %v1489 = vsub.f32 %v1484, %v1488
        %v1490 = vmul.f32 %v1489, 1.442695
        %v1491 = vpow.pop %v1490
        %v1492 = vsel %vm1485, %v1491, 0.0
        %1493 = vadd.xlane.f32.xlu0 %v1492
        %v1494 = vpop.xlane.xlu0 %1493
        %v1495 = vrcp.pop %v1494
        %v1496 = vpack.c.bf16 %v1491, %v1491
        %v1497 = vld [vmem:[#allocation3] sm:$0xf]
        %v1498 = vld [vmem:[#allocation3 + $0x8] sm:$0xf]
        %v1499 = vld [vmem:[#allocation3 + $0x10] sm:$0xf]
        %v1503 = vunpack.c.l.b16 %v1497
        %v1504 = vunpack.c.l.b16 %v1498
        %v1505 = vunpack.c.l.b16 %v1499
        %v1506 = vpack.c.b16 %v1504, %v1503
        %v1507 = vpack.c.b16 %v1505, %v1505
        %v1510 = vsel %vm1485, %v1496, 0
        %vm1512 = vcmask 1043456
        %v1514 = vsel %vm1512, %v1507, 0
        %1516 = vmatprep.subr.bf16.mxu0 0
        %1517 = vmatpush1.bf16.msra.mxu0 0
        %1518 = vmatprep.subr.bf16.mxu0 0
        %1519 = vmatpush1.bf16.msra.mxu0 0
        %1520 = vmatprep.subr.bf16.mxu0 0
        %1521 = vmatpush1.bf16.msra.mxu0 0
        %1522 = vmatprep.subr.bf16.mxu0 0
        %1523 = vmatpush1.bf16.msra.mxu0 0
        %1524 = vmatprep.subr.bf16.mxu0 0
        %1525 = vmatpush1.bf16.msra.mxu0 0
        %1526 = vmatprep.subr.bf16.mxu0 0
        %1527 = vmatpush1.bf16.msra.mxu0 0
        %1528 = vmatprep.subr.bf16.mxu0 0
        %1529 = vmatpush1.bf16.msra.mxu0 %v1514
        %1530 = vmatprep.subr.bf16.mxu0 0
        %1531 = vmatpush1.bf16.msra.mxu0 %v1506
        %1532 = vmatprep.subr.bf16.mxu0 0
        %1533 = vmatpush2.bf16.msra.mxu0 0
        %1534 = vmatprep.subr.bf16.mxu0 0
        %1535 = vmatpush2.bf16.msra.mxu0 0
        %1536 = vmatprep.subr.bf16.mxu0 0
        %1537 = vmatpush2.bf16.msra.mxu0 0
        %1538 = vmatprep.subr.bf16.mxu0 0
        %1539 = vmatpush2.bf16.msra.mxu0 0
        %1540 = vmatprep.subr.bf16.mxu0 0
        %1541 = vmatpush2.bf16.msra.mxu0 0
        %1542 = vmatprep.subr.bf16.mxu0 0
        %1543 = vmatpush2.bf16.msra.mxu0 0
        %1544 = vmatprep.subr.bf16.mxu0 0
        %1545 = vmatpush2.bf16.msra.mxu0 0
        %1546 = vmatprep.subr.bf16.mxu0 0
        %1547 = vmatpush2.bf16.msra.mxu0 0
        %1548 = vmatprep.mubr.bf16.mxu0 0
        %1549 = vmatmul.mubr.bf16.gmra.mxu0 %v1510
        %v1550 = vpop.f32.mrf.mxu0
        %v1551 = vadd.f32 0.0, %v1550
        %v1552 = vpop.f32.mrf.mxu0
        %v1553 = vpop.f32.mrf.mxu0
        %v1554 = vpop.f32.mrf.mxu0
        %1555 = vdwg.mxu0
        %v1556 = vmul.f32 %v1551, %v1495
        %v1557 = vpack.c.bf16 %v1556, %v1556
        %vm1558 = vcmask 519168
        %1559 = vst.msk [vmem:[#allocation5] sm:$0xf] %vm1558, %v1557
        %v1560 = vld [vmem:[#allocation4] sm:$0xf]
        %v1561 = vld [vmem:[#allocation2 + $0x20] sm:$0xf]
        %v1562 = vld [vmem:[#allocation2 + $0x24] sm:$0xf]
        %v1563 = vld [vmem:[#allocation2 + $0x28] sm:$0xf]
        %v1564 = vld [vmem:[#allocation2 + $0x2c] sm:$0xf]
        %v1565 = vld [vmem:[#allocation2 + $0x30] sm:$0xf]
        %v1566 = vld [vmem:[#allocation2 + $0x34] sm:$0xf]
        %v1567 = vld [vmem:[#allocation2 + $0x38] sm:$0xf]
        %v1568 = vld [vmem:[#allocation2 + $0x3c] sm:$0xf]
        %v1570 = vunpack.c.l.b16 %v1560
        %v1571 = vpack.c.b16 %v1570, %v1570
        %1572 = vrot.lane.b32.xlu0 %v1571, 64
        %v1573 = vpop.permute.xlu0 %1572
        %v1582 = vunpack.c.l.b16 %v1561
        %v1583 = vunpack.c.l.b16 %v1562
        %v1584 = vunpack.c.l.b16 %v1563
        %v1585 = vunpack.c.l.b16 %v1564
        %v1586 = vunpack.c.l.b16 %v1565
        %v1587 = vunpack.c.l.b16 %v1566
        %v1588 = vunpack.c.l.b16 %v1567
        %v1589 = vunpack.c.l.b16 %v1568
        %v1590 = vpack.c.b16 %v1583, %v1582
        %v1591 = vpack.c.b16 %v1585, %v1584
        %v1592 = vpack.c.b16 %v1587, %v1586
        %v1593 = vpack.c.b16 %v1589, %v1588
        %v1599 = vsel %vm1440, %v1573, 0
        %1601 = vmatprep.subr.bf16.mxu0 0
        %1602 = vmatpush1.bf16.msra.mxu0 0
        %1603 = vmatprep.subr.bf16.mxu0 0
        %1604 = vmatpush1.bf16.msra.mxu0 0
        %1605 = vmatprep.subr.bf16.mxu0 0
        %1606 = vmatpush1.bf16.msra.mxu0 0
        %1607 = vmatprep.subr.bf16.mxu0 0
        %1608 = vmatpush1.bf16.msra.mxu0 0
        %1609 = vmatprep.subr.bf16.mxu0 0
        %1610 = vmatpush1.bf16.msra.mxu0 %v1593
        %1611 = vmatprep.subr.bf16.mxu0 0
        %1612 = vmatpush1.bf16.msra.mxu0 %v1592
        %1613 = vmatprep.subr.bf16.mxu0 0
        %1614 = vmatpush1.bf16.msra.mxu0 %v1591
        %1615 = vmatprep.subr.bf16.mxu0 0
        %1616 = vmatpush1.bf16.msra.mxu0 %v1590
        %1617 = vmatprep.subr.bf16.mxu0 0
        %1618 = vmatpush2.bf16.msra.mxu0 0
        %1619 = vmatprep.subr.bf16.mxu0 0
        %1620 = vmatpush2.bf16.msra.mxu0 0
        %1621 = vmatprep.subr.bf16.mxu0 0
        %1622 = vmatpush2.bf16.msra.mxu0 0
        %1623 = vmatprep.subr.bf16.mxu0 0
        %1624 = vmatpush2.bf16.msra.mxu0 0
        %1625 = vmatprep.subr.bf16.mxu0 0
        %1626 = vmatpush2.bf16.msra.mxu0 0
        %1627 = vmatprep.subr.bf16.mxu0 0
        %1628 = vmatpush2.bf16.msra.mxu0 0
        %1629 = vmatprep.subr.bf16.mxu0 0
        %1630 = vmatpush2.bf16.msra.mxu0 0
        %1631 = vmatprep.subr.bf16.mxu0 0
        %1632 = vmatpush2.bf16.msra.mxu0 0
        %1633 = vmatprep.mubr.bf16.mxu0 0
        %1634 = vmatmul.mubr.bf16.gmra.mxu0 %v1599
        %v1635 = vpop.f32.mrf.mxu0
        %v1636 = vadd.f32 0.0, %v1635
        %v1637 = vpop.f32.mrf.mxu0
        %v1638 = vpop.f32.mrf.mxu0
        %v1639 = vpop.f32.mrf.mxu0
        %1640 = vdwg.mxu0
        %v1641 = vsel %vm1406, %v1636, -1e+30
        %v1642 = vsel %vm1485, %v1641, -inf
        %1643 = vmax.xlane.f32.xlu0 %v1642
        %v1644 = vpop.xlane.xlu0 %1643
        %v1645 = vsub.f32 %v1641, %v1644
        %v1646 = vmul.f32 %v1645, 1.442695
        %v1647 = vpow.pop %v1646
        %v1648 = vsel %vm1485, %v1647, 0.0
        %1649 = vadd.xlane.f32.xlu0 %v1648
        %v1650 = vpop.xlane.xlu0 %1649
        %v1651 = vrcp.pop %v1650
        %v1652 = vpack.c.bf16 %v1647, %v1647
        %v1653 = vld [vmem:[#allocation3] sm:$0xf]
        %v1654 = vld [vmem:[#allocation3 + $0x8] sm:$0xf]
        %v1655 = vld [vmem:[#allocation3 + $0x10] sm:$0xf]
        %v1659 = vunpack.c.l.b16 %v1653
        %v1660 = vunpack.c.l.b16 %v1654
        %v1661 = vunpack.c.l.b16 %v1655
        %v1662 = vpack.c.b16 %v1660, %v1659
        %v1663 = vpack.c.b16 %v1661, %v1661
        %1664 = vrot.lane.b32.xlu0 %v1662, 64
        %v1665 = vpop.permute.xlu0 %1664
        %1666 = vrot.lane.b32.xlu0 %v1663, 64
        %v1667 = vpop.permute.xlu0 %1666
        %v1670 = vsel %vm1485, %v1652, 0
        %v1673 = vsel %vm1512, %v1667, 0
        %1675 = vmatprep.subr.bf16.mxu0 0
        %1676 = vmatpush1.bf16.msra.mxu0 0
        %1677 = vmatprep.subr.bf16.mxu0 0
        %1678 = vmatpush1.bf16.msra.mxu0 0
        %1679 = vmatprep.subr.bf16.mxu0 0
        %1680 = vmatpush1.bf16.msra.mxu0 0
        %1681 = vmatprep.subr.bf16.mxu0 0
        %1682 = vmatpush1.bf16.msra.mxu0 0
        %1683 = vmatprep.subr.bf16.mxu0 0
        %1684 = vmatpush1.bf16.msra.mxu0 0
        %1685 = vmatprep.subr.bf16.mxu0 0
        %1686 = vmatpush1.bf16.msra.mxu0 0
        %1687 = vmatprep.subr.bf16.mxu0 0
        %1688 = vmatpush1.bf16.msra.mxu0 %v1673
        %1689 = vmatprep.subr.bf16.mxu0 0
        %1690 = vmatpush1.bf16.msra.mxu0 %v1665
        %1691 = vmatprep.subr.bf16.mxu0 0
        %1692 = vmatpush2.bf16.msra.mxu0 0
        %1693 = vmatprep.subr.bf16.mxu0 0
        %1694 = vmatpush2.bf16.msra.mxu0 0
        %1695 = vmatprep.subr.bf16.mxu0 0
        %1696 = vmatpush2.bf16.msra.mxu0 0
        %1697 = vmatprep.subr.bf16.mxu0 0
        %1698 = vmatpush2.bf16.msra.mxu0 0
        %1699 = vmatprep.subr.bf16.mxu0 0
        %1700 = vmatpush2.bf16.msra.mxu0 0
        %1701 = vmatprep.subr.bf16.mxu0 0
        %1702 = vmatpush2.bf16.msra.mxu0 0
        %1703 = vmatprep.subr.bf16.mxu0 0
        %1704 = vmatpush2.bf16.msra.mxu0 0
        %1705 = vmatprep.subr.bf16.mxu0 0
        %1706 = vmatpush2.bf16.msra.mxu0 0
        %1707 = vmatprep.mubr.bf16.mxu0 0
        %1708 = vmatmul.mubr.bf16.gmra.mxu0 %v1670
        %v1709 = vpop.f32.mrf.mxu0
        %v1710 = vadd.f32 0.0, %v1709
        %v1711 = vpop.f32.mrf.mxu0
        %v1712 = vpop.f32.mrf.mxu0
        %v1713 = vpop.f32.mrf.mxu0
        %1714 = vdwg.mxu0
        %v1715 = vmul.f32 %v1710, %v1651
        %v1716 = vpack.c.bf16 %v1715, %v1715
        %v1718 = vunpack.c.l.b16 %v1716
        %v1719 = vpack.c.b16 %v1718, %v1718
        %1720 = vrot.lane.b32.xlu0 %v1719, 64
        %v1721 = vpop.permute.xlu0 %1720
        %vm1723 = vcmask 1043968
        %1724 = vst.msk [vmem:[#allocation5] sm:$0xf] %vm1723, %v1721
        %v1725 = vld [vmem:[#allocation4 + $0x4] sm:$0xf]
        %v1726 = vld [vmem:[#allocation2 + $0x40] sm:$0xf]
        %v1727 = vld [vmem:[#allocation2 + $0x44] sm:$0xf]
        %v1728 = vld [vmem:[#allocation2 + $0x48] sm:$0xf]
        %v1729 = vld [vmem:[#allocation2 + $0x4c] sm:$0xf]
        %v1730 = vld [vmem:[#allocation2 + $0x50] sm:$0xf]
        %v1731 = vld [vmem:[#allocation2 + $0x54] sm:$0xf]
        %v1732 = vld [vmem:[#allocation2 + $0x58] sm:$0xf]
        %v1733 = vld [vmem:[#allocation2 + $0x5c] sm:$0xf]
        %v1742 = vunpack.c.l.b16 %v1726
        %v1743 = vunpack.c.l.b16 %v1727
        %v1744 = vunpack.c.l.b16 %v1728
        %v1745 = vunpack.c.l.b16 %v1729
        %v1746 = vunpack.c.l.b16 %v1730
        %v1747 = vunpack.c.l.b16 %v1731
        %v1748 = vunpack.c.l.b16 %v1732
        %v1749 = vunpack.c.l.b16 %v1733
        %v1750 = vpack.c.b16 %v1743, %v1742
        %v1751 = vpack.c.b16 %v1745, %v1744
        %v1752 = vpack.c.b16 %v1747, %v1746
        %v1753 = vpack.c.b16 %v1749, %v1748
        %v1759 = vsel %vm1440, %v1725, 0
        %1761 = vmatprep.subr.bf16.mxu0 0
        %1762 = vmatpush1.bf16.msra.mxu0 0
        %1763 = vmatprep.subr.bf16.mxu0 0
        %1764 = vmatpush1.bf16.msra.mxu0 0
        %1765 = vmatprep.subr.bf16.mxu0 0
        %1766 = vmatpush1.bf16.msra.mxu0 0
        %1767 = vmatprep.subr.bf16.mxu0 0
        %1768 = vmatpush1.bf16.msra.mxu0 0
        %1769 = vmatprep.subr.bf16.mxu0 0
        %1770 = vmatpush1.bf16.msra.mxu0 %v1753
        %1771 = vmatprep.subr.bf16.mxu0 0
        %1772 = vmatpush1.bf16.msra.mxu0 %v1752
        %1773 = vmatprep.subr.bf16.mxu0 0
        %1774 = vmatpush1.bf16.msra.mxu0 %v1751
        %1775 = vmatprep.subr.bf16.mxu0 0
        %1776 = vmatpush1.bf16.msra.mxu0 %v1750
        %1777 = vmatprep.subr.bf16.mxu0 0
        %1778 = vmatpush2.bf16.msra.mxu0 0
        %1779 = vmatprep.subr.bf16.mxu0 0
        %1780 = vmatpush2.bf16.msra.mxu0 0
        %1781 = vmatprep.subr.bf16.mxu0 0
        %1782 = vmatpush2.bf16.msra.mxu0 0
        %1783 = vmatprep.subr.bf16.mxu0 0
        %1784 = vmatpush2.bf16.msra.mxu0 0
        %1785 = vmatprep.subr.bf16.mxu0 0
        %1786 = vmatpush2.bf16.msra.mxu0 0
        %1787 = vmatprep.subr.bf16.mxu0 0
        %1788 = vmatpush2.bf16.msra.mxu0 0
        %1789 = vmatprep.subr.bf16.mxu0 0
        %1790 = vmatpush2.bf16.msra.mxu0 0
        %1791 = vmatprep.subr.bf16.mxu0 0
        %1792 = vmatpush2.bf16.msra.mxu0 0
        %1793 = vmatprep.mubr.bf16.mxu0 0
        %1794 = vmatmul.mubr.bf16.gmra.mxu0 %v1759
        %v1795 = vpop.f32.mrf.mxu0
        %v1796 = vadd.f32 0.0, %v1795
        %v1797 = vpop.f32.mrf.mxu0
        %v1798 = vpop.f32.mrf.mxu0
        %v1799 = vpop.f32.mrf.mxu0
        %1800 = vdwg.mxu0
        %v1801 = vsel %vm1406, %v1796, -1e+30
        %v1802 = vsel %vm1485, %v1801, -inf
        %1803 = vmax.xlane.f32.xlu0 %v1802
        %v1804 = vpop.xlane.xlu0 %1803
        %v1805 = vsub.f32 %v1801, %v1804
        %v1806 = vmul.f32 %v1805, 1.442695
        %v1807 = vpow.pop %v1806
        %v1808 = vsel %vm1485, %v1807, 0.0
        %1809 = vadd.xlane.f32.xlu0 %v1808
        %v1810 = vpop.xlane.xlu0 %1809
        %v1811 = vrcp.pop %v1810
        %v1812 = vpack.c.bf16 %v1807, %v1807
        %v1813 = vld [vmem:[#allocation3 + $0x4] sm:$0xf]
        %v1814 = vld [vmem:[#allocation3 + $0xc] sm:$0xf]
        %v1815 = vld [vmem:[#allocation3 + $0x14] sm:$0xf]
        %v1819 = vunpack.c.l.b16 %v1813
        %v1820 = vunpack.c.l.b16 %v1814
        %v1821 = vunpack.c.l.b16 %v1815
        %v1822 = vpack.c.b16 %v1820, %v1819
        %v1823 = vpack.c.b16 %v1821, %v1821
        %v1826 = vsel %vm1485, %v1812, 0
        %v1829 = vsel %vm1512, %v1823, 0
        %1831 = vmatprep.subr.bf16.mxu0 0
        %1832 = vmatpush1.bf16.msra.mxu0 0
        %1833 = vmatprep.subr.bf16.mxu0 0
        %1834 = vmatpush1.bf16.msra.mxu0 0
        %1835 = vmatprep.subr.bf16.mxu0 0
        %1836 = vmatpush1.bf16.msra.mxu0 0
        %1837 = vmatprep.subr.bf16.mxu0 0
        %1838 = vmatpush1.bf16.msra.mxu0 0
        %1839 = vmatprep.subr.bf16.mxu0 0
        %1840 = vmatpush1.bf16.msra.mxu0 0
        %1841 = vmatprep.subr.bf16.mxu0 0
        %1842 = vmatpush1.bf16.msra.mxu0 0
        %1843 = vmatprep.subr.bf16.mxu0 0
        %1844 = vmatpush1.bf16.msra.mxu0 %v1829
        %1845 = vmatprep.subr.bf16.mxu0 0
        %1846 = vmatpush1.bf16.msra.mxu0 %v1822
        %1847 = vmatprep.subr.bf16.mxu0 0
        %1848 = vmatpush2.bf16.msra.mxu0 0
        %1849 = vmatprep.subr.bf16.mxu0 0
        %1850 = vmatpush2.bf16.msra.mxu0 0
        %1851 = vmatprep.subr.bf16.mxu0 0
        %1852 = vmatpush2.bf16.msra.mxu0 0
        %1853 = vmatprep.subr.bf16.mxu0 0
        %1854 = vmatpush2.bf16.msra.mxu0 0
        %1855 = vmatprep.subr.bf16.mxu0 0
        %1856 = vmatpush2.bf16.msra.mxu0 0
        %1857 = vmatprep.subr.bf16.mxu0 0
        %1858 = vmatpush2.bf16.msra.mxu0 0
        %1859 = vmatprep.subr.bf16.mxu0 0
        %1860 = vmatpush2.bf16.msra.mxu0 0
        %1861 = vmatprep.subr.bf16.mxu0 0
        %1862 = vmatpush2.bf16.msra.mxu0 0
        %1863 = vmatprep.mubr.bf16.mxu0 0
        %1864 = vmatmul.mubr.bf16.gmra.mxu0 %v1826
        %v1865 = vpop.f32.mrf.mxu0
        %v1866 = vadd.f32 0.0, %v1865
        %v1867 = vpop.f32.mrf.mxu0
        %v1868 = vpop.f32.mrf.mxu0
        %v1869 = vpop.f32.mrf.mxu0
        %1870 = vdwg.mxu0
        %v1871 = vmul.f32 %v1866, %v1811
        %v1872 = vpack.c.bf16 %v1871, %v1871
        %1873 = vst.msk [vmem:[#allocation5 + $0x4] sm:$0xf] %vm1558, %v1872
        %v1874 = vld [vmem:[#allocation4 + $0x4] sm:$0xf]
        %v1875 = vld [vmem:[#allocation2 + $0x60] sm:$0xf]
        %v1876 = vld [vmem:[#allocation2 + $0x64] sm:$0xf]
        %v1877 = vld [vmem:[#allocation2 + $0x68] sm:$0xf]
        %v1878 = vld [vmem:[#allocation2 + $0x6c] sm:$0xf]
        %v1879 = vld [vmem:[#allocation2 + $0x70] sm:$0xf]
        %v1880 = vld [vmem:[#allocation2 + $0x74] sm:$0xf]
        %v1881 = vld [vmem:[#allocation2 + $0x78] sm:$0xf]
        %v1882 = vld [vmem:[#allocation2 + $0x7c] sm:$0xf]
        %v1884 = vunpack.c.l.b16 %v1874
        %v1885 = vpack.c.b16 %v1884, %v1884
        %1886 = vrot.lane.b32.xlu0 %v1885, 64
        %v1887 = vpop.permute.xlu0 %1886
        %v1896 = vunpack.c.l.b16 %v1875
        %v1897 = vunpack.c.l.b16 %v1876
        %v1898 = vunpack.c.l.b16 %v1877
        %v1899 = vunpack.c.l.b16 %v1878
        %v1900 = vunpack.c.l.b16 %v1879
        %v1901 = vunpack.c.l.b16 %v1880
        %v1902 = vunpack.c.l.b16 %v1881
        %v1903 = vunpack.c.l.b16 %v1882
        %v1904 = vpack.c.b16 %v1897, %v1896
        %v1905 = vpack.c.b16 %v1899, %v1898
        %v1906 = vpack.c.b16 %v1901, %v1900
        %v1907 = vpack.c.b16 %v1903, %v1902
        %v1913 = vsel %vm1440, %v1887, 0
        %1915 = vmatprep.subr.bf16.mxu0 0
        %1916 = vmatpush1.bf16.msra.mxu0 0
        %1917 = vmatprep.subr.bf16.mxu0 0
        %1918 = vmatpush1.bf16.msra.mxu0 0
        %1919 = vmatprep.subr.bf16.mxu0 0
        %1920 = vmatpush1.bf16.msra.mxu0 0
        %1921 = vmatprep.subr.bf16.mxu0 0
        %1922 = vmatpush1.bf16.msra.mxu0 0
        %1923 = vmatprep.subr.bf16.mxu0 0
        %1924 = vmatpush1.bf16.msra.mxu0 %v1907
        %1925 = vmatprep.subr.bf16.mxu0 0
        %1926 = vmatpush1.bf16.msra.mxu0 %v1906
        %1927 = vmatprep.subr.bf16.mxu0 0
        %1928 = vmatpush1.bf16.msra.mxu0 %v1905
        %1929 = vmatprep.subr.bf16.mxu0 0
        %1930 = vmatpush1.bf16.msra.mxu0 %v1904
        %1931 = vmatprep.subr.bf16.mxu0 0
        %1932 = vmatpush2.bf16.msra.mxu0 0
        %1933 = vmatprep.subr.bf16.mxu0 0
        %1934 = vmatpush2.bf16.msra.mxu0 0
        %1935 = vmatprep.subr.bf16.mxu0 0
        %1936 = vmatpush2.bf16.msra.mxu0 0
        %1937 = vmatprep.subr.bf16.mxu0 0
        %1938 = vmatpush2.bf16.msra.mxu0 0
        %1939 = vmatprep.subr.bf16.mxu0 0
        %1940 = vmatpush2.bf16.msra.mxu0 0
        %1941 = vmatprep.subr.bf16.mxu0 0
        %1942 = vmatpush2.bf16.msra.mxu0 0
        %1943 = vmatprep.subr.bf16.mxu0 0
        %1944 = vmatpush2.bf16.msra.mxu0 0
        %1945 = vmatprep.subr.bf16.mxu0 0
        %1946 = vmatpush2.bf16.msra.mxu0 0
        %1947 = vmatprep.mubr.bf16.mxu0 0
        %1948 = vmatmul.mubr.bf16.gmra.mxu0 %v1913
        %v1949 = vpop.f32.mrf.mxu0
        %v1950 = vadd.f32 0.0, %v1949
        %v1951 = vpop.f32.mrf.mxu0
        %v1952 = vpop.f32.mrf.mxu0
        %v1953 = vpop.f32.mrf.mxu0
        %1954 = vdwg.mxu0
        %v1955 = vsel %vm1406, %v1950, -1e+30
        %v1956 = vsel %vm1485, %v1955, -inf
        %1957 = vmax.xlane.f32.xlu0 %v1956
        %v1958 = vpop.xlane.xlu0 %1957
        %v1959 = vsub.f32 %v1955, %v1958
        %v1960 = vmul.f32 %v1959, 1.442695
        %v1961 = vpow.pop %v1960
        %v1962 = vsel %vm1485, %v1961, 0.0
        %1963 = vadd.xlane.f32.xlu0 %v1962
        %v1964 = vpop.xlane.xlu0 %1963
        %v1965 = vrcp.pop %v1964
        %v1966 = vpack.c.bf16 %v1961, %v1961
        %v1967 = vld [vmem:[#allocation3 + $0x4] sm:$0xf]
        %v1968 = vld [vmem:[#allocation3 + $0xc] sm:$0xf]
        %v1969 = vld [vmem:[#allocation3 + $0x14] sm:$0xf]
        %v1973 = vunpack.c.l.b16 %v1967
        %v1974 = vunpack.c.l.b16 %v1968
        %v1975 = vunpack.c.l.b16 %v1969
        %v1976 = vpack.c.b16 %v1974, %v1973
        %v1977 = vpack.c.b16 %v1975, %v1975
        %1978 = vrot.lane.b32.xlu0 %v1976, 64
        %v1979 = vpop.permute.xlu0 %1978
        %1980 = vrot.lane.b32.xlu0 %v1977, 64
        %v1981 = vpop.permute.xlu0 %1980
        %v1984 = vsel %vm1485, %v1966, 0
        %v1987 = vsel %vm1512, %v1981, 0
        %1989 = vmatprep.subr.bf16.mxu0 0
        %1990 = vmatpush1.bf16.msra.mxu0 0
        %1991 = vmatprep.subr.bf16.mxu0 0
        %1992 = vmatpush1.bf16.msra.mxu0 0
        %1993 = vmatprep.subr.bf16.mxu0 0
        %1994 = vmatpush1.bf16.msra.mxu0 0
        %1995 = vmatprep.subr.bf16.mxu0 0
        %1996 = vmatpush1.bf16.msra.mxu0 0
        %1997 = vmatprep.subr.bf16.mxu0 0
        %1998 = vmatpush1.bf16.msra.mxu0 0
        %1999 = vmatprep.subr.bf16.mxu0 0
        %2000 = vmatpush1.bf16.msra.mxu0 0
        %2001 = vmatprep.subr.bf16.mxu0 0
        %2002 = vmatpush1.bf16.msra.mxu0 %v1987
        %2003 = vmatprep.subr.bf16.mxu0 0
        %2004 = vmatpush1.bf16.msra.mxu0 %v1979
        %2005 = vmatprep.subr.bf16.mxu0 0
        %2006 = vmatpush2.bf16.msra.mxu0 0
        %2007 = vmatprep.subr.bf16.mxu0 0
        %2008 = vmatpush2.bf16.msra.mxu0 0
        %2009 = vmatprep.subr.bf16.mxu0 0
        %2010 = vmatpush2.bf16.msra.mxu0 0
        %2011 = vmatprep.subr.bf16.mxu0 0
        %2012 = vmatpush2.bf16.msra.mxu0 0
        %2013 = vmatprep.subr.bf16.mxu0 0
        %2014 = vmatpush2.bf16.msra.mxu0 0
        %2015 = vmatprep.subr.bf16.mxu0 0
        %2016 = vmatpush2.bf16.msra.mxu0 0
        %2017 = vmatprep.subr.bf16.mxu0 0
        %2018 = vmatpush2.bf16.msra.mxu0 0
        %2019 = vmatprep.subr.bf16.mxu0 0
        %2020 = vmatpush2.bf16.msra.mxu0 0
        %2021 = vmatprep.mubr.bf16.mxu0 0
        %2022 = vmatmul.mubr.bf16.gmra.mxu0 %v1984
        %v2023 = vpop.f32.mrf.mxu0
        %v2024 = vadd.f32 0.0, %v2023
        %v2025 = vpop.f32.mrf.mxu0
        %v2026 = vpop.f32.mrf.mxu0
        %v2027 = vpop.f32.mrf.mxu0
        %2028 = vdwg.mxu0
        %v2029 = vmul.f32 %v2024, %v1965
        %v2030 = vpack.c.bf16 %v2029, %v2029
        %v2032 = vunpack.c.l.b16 %v2030
        %v2033 = vpack.c.b16 %v2032, %v2032
        %2034 = vrot.lane.b32.xlu0 %v2033, 64
        %v2035 = vpop.permute.xlu0 %2034
        %2037 = vst.msk [vmem:[#allocation5 + $0x4] sm:$0xf] %vm1723, %v2035
        %v2038 = vld [vmem:[#allocation5] sm:$0xff]
        %v2039 = vld [vmem:[#allocation12] sm:$0xff]
        %v2040 = vld [vmem:[#allocation12 + $0x8] sm:$0xff]
        %v2041 = vld [vmem:[#allocation12 + $0x10] sm:$0xff]
        %v2042 = vld [vmem:[#allocation12 + $0x18] sm:$0xff]
        %v2043 = vld [vmem:[#allocation12 + $0x20] sm:$0xff]
        %v2044 = vld [vmem:[#allocation12 + $0x28] sm:$0xff]
        %v2045 = vld [vmem:[#allocation12 + $0x30] sm:$0xff]
        %v2046 = vld [vmem:[#allocation12 + $0x38] sm:$0xff]
        %v2047 = vld [vmem:[#allocation12 + $0x40] sm:$0xff]
        %v2048 = vld [vmem:[#allocation12 + $0x48] sm:$0xff]
        %v2049 = vld [vmem:[#allocation12 + $0x50] sm:$0xff]
        %v2050 = vld [vmem:[#allocation12 + $0x58] sm:$0xff]
        %v2051 = vld [vmem:[#allocation12 + $0x60] sm:$0xff]
        %v2052 = vld [vmem:[#allocation12 + $0x68] sm:$0xff]
        %v2053 = vld [vmem:[#allocation12 + $0x70] sm:$0xff]
        %v2054 = vld [vmem:[#allocation12 + $0x78] sm:$0xff]
        %v2055 = vld [vmem:[#allocation12 + $0x80] sm:$0xff]
        %v2056 = vld [vmem:[#allocation12 + $0x88] sm:$0xff]
        %v2057 = vld [vmem:[#allocation12 + $0x90] sm:$0xff]
        %v2058 = vld [vmem:[#allocation12 + $0x98] sm:$0xff]
        %v2059 = vld [vmem:[#allocation12 + $0xa0] sm:$0xff]
        %v2060 = vld [vmem:[#allocation12 + $0xa8] sm:$0xff]
        %v2061 = vld [vmem:[#allocation12 + $0xb0] sm:$0xff]
        %v2062 = vld [vmem:[#allocation12 + $0xb8] sm:$0xff]
        %v2063 = vld [vmem:[#allocation12 + $0xc0] sm:$0xff]
        %v2064 = vld [vmem:[#allocation12 + $0xc8] sm:$0xff]
        %v2065 = vld [vmem:[#allocation12 + $0xd0] sm:$0xff]
        %v2066 = vld [vmem:[#allocation12 + $0xd8] sm:$0xff]
        %v2067 = vld [vmem:[#allocation12 + $0xe0] sm:$0xff]
        %v2068 = vld [vmem:[#allocation12 + $0xe8] sm:$0xff]
        %v2069 = vld [vmem:[#allocation12 + $0xf0] sm:$0xff]
        %v2070 = vld [vmem:[#allocation12 + $0xf8] sm:$0xff]
        %v2071 = vld [vmem:[%s6] sm:$0x3]
        %v2073 = vlaneseq
        %v2074 = vshrl.u32 %v2073, 7
        %v2075 = vsub.s32 0, %v2074
        %v2076 = vrot.slane %v2071, %v2075
        %v2077 = vlaneseq
        %v2078 = vshrl.u32 %v2077, 7
        %v2079 = vsub.s32 1, %v2078
        %v2080 = vrot.slane %v2071, %v2079
        %v2084 = vunpack.c.l.b16 %v2038
        %v2085 = vunpack.c.h.b16 %v2038
        %v2086 = vpack.c.b16 %v2084, %v2084
        %v2087 = vpack.c.b16 %v2085, %v2085
        %v2122 = vunpack.c.l.b16 %v2039
        %v2123 = vunpack.c.h.b16 %v2039
        %v2124 = vunpack.c.l.b16 %v2040
        %v2125 = vunpack.c.h.b16 %v2040
        %v2126 = vunpack.c.l.b16 %v2041
        %v2127 = vunpack.c.h.b16 %v2041
        %v2128 = vunpack.c.l.b16 %v2042
        %v2129 = vunpack.c.h.b16 %v2042
        %v2130 = vunpack.c.l.b16 %v2043
        %v2131 = vunpack.c.h.b16 %v2043
        %v2132 = vunpack.c.l.b16 %v2044
        %v2133 = vunpack.c.h.b16 %v2044
        %v2134 = vunpack.c.l.b16 %v2045
        %v2135 = vunpack.c.h.b16 %v2045
        %v2136 = vunpack.c.l.b16 %v2046
        %v2137 = vunpack.c.h.b16 %v2046
        %v2138 = vunpack.c.l.b16 %v2047
        %v2139 = vunpack.c.h.b16 %v2047
        %v2140 = vunpack.c.l.b16 %v2048
        %v2141 = vunpack.c.h.b16 %v2048
        %v2142 = vunpack.c.l.b16 %v2049
        %v2143 = vunpack.c.h.b16 %v2049
        %v2144 = vunpack.c.l.b16 %v2050
        %v2145 = vunpack.c.h.b16 %v2050
        %v2146 = vunpack.c.l.b16 %v2051
        %v2147 = vunpack.c.h.b16 %v2051
        %v2148 = vunpack.c.l.b16 %v2052
        %v2149 = vunpack.c.h.b16 %v2052
        %v2150 = vunpack.c.l.b16 %v2053
        %v2151 = vunpack.c.h.b16 %v2053
        %v2152 = vunpack.c.l.b16 %v2054
        %v2153 = vunpack.c.h.b16 %v2054
        %v2154 = vunpack.c.l.b16 %v2055
        %v2155 = vunpack.c.h.b16 %v2055
        %v2156 = vunpack.c.l.b16 %v2056
        %v2157 = vunpack.c.h.b16 %v2056
        %v2158 = vunpack.c.l.b16 %v2057
        %v2159 = vunpack.c.h.b16 %v2057
        %v2160 = vunpack.c.l.b16 %v2058
        %v2161 = vunpack.c.h.b16 %v2058
        %v2162 = vunpack.c.l.b16 %v2059
        %v2163 = vunpack.c.h.b16 %v2059
        %v2164 = vunpack.c.l.b16 %v2060
        %v2165 = vunpack.c.h.b16 %v2060
        %v2166 = vunpack.c.l.b16 %v2061
        %v2167 = vunpack.c.h.b16 %v2061
        %v2168 = vunpack.c.l.b16 %v2062
        %v2169 = vunpack.c.h.b16 %v2062
        %v2170 = vunpack.c.l.b16 %v2063
        %v2171 = vunpack.c.h.b16 %v2063
        %v2172 = vunpack.c.l.b16 %v2064
        %v2173 = vunpack.c.h.b16 %v2064
        %v2174 = vunpack.c.l.b16 %v2065
        %v2175 = vunpack.c.h.b16 %v2065
        %v2176 = vunpack.c.l.b16 %v2066
        %v2177 = vunpack.c.h.b16 %v2066
        %v2178 = vunpack.c.l.b16 %v2067
        %v2179 = vunpack.c.h.b16 %v2067
        %v2180 = vunpack.c.l.b16 %v2068
        %v2181 = vunpack.c.h.b16 %v2068
        %v2182 = vunpack.c.l.b16 %v2069
        %v2183 = vunpack.c.h.b16 %v2069
        %v2184 = vunpack.c.l.b16 %v2070
        %v2185 = vunpack.c.h.b16 %v2070
        %v2186 = vpack.c.b16 %v2124, %v2122
        %v2187 = vpack.c.b16 %v2125, %v2123
        %v2188 = vpack.c.b16 %v2128, %v2126
        %v2189 = vpack.c.b16 %v2129, %v2127
        %v2190 = vpack.c.b16 %v2132, %v2130
        %v2191 = vpack.c.b16 %v2133, %v2131
        %v2192 = vpack.c.b16 %v2136, %v2134
        %v2193 = vpack.c.b16 %v2137, %v2135
        %v2194 = vpack.c.b16 %v2140, %v2138
        %v2195 = vpack.c.b16 %v2141, %v2139
        %v2196 = vpack.c.b16 %v2144, %v2142
        %v2197 = vpack.c.b16 %v2145, %v2143
        %v2198 = vpack.c.b16 %v2148, %v2146
        %v2199 = vpack.c.b16 %v2149, %v2147
        %v2200 = vpack.c.b16 %v2152, %v2150
        %v2201 = vpack.c.b16 %v2153, %v2151
        %v2202 = vpack.c.b16 %v2156, %v2154
        %v2203 = vpack.c.b16 %v2157, %v2155
        %v2204 = vpack.c.b16 %v2160, %v2158
        %v2205 = vpack.c.b16 %v2161, %v2159
        %v2206 = vpack.c.b16 %v2164, %v2162
        %v2207 = vpack.c.b16 %v2165, %v2163
        %v2208 = vpack.c.b16 %v2168, %v2166
        %v2209 = vpack.c.b16 %v2169, %v2167
        %v2210 = vpack.c.b16 %v2172, %v2170
        %v2211 = vpack.c.b16 %v2173, %v2171
        %v2212 = vpack.c.b16 %v2176, %v2174
        %v2213 = vpack.c.b16 %v2177, %v2175
        %v2214 = vpack.c.b16 %v2180, %v2178
        %v2215 = vpack.c.b16 %v2181, %v2179
        %v2216 = vpack.c.b16 %v2184, %v2182
        %v2217 = vpack.c.b16 %v2185, %v2183
        %2250 = vmatprep.subr.bf16.mxu0 %v2201
        %2251 = vmatpush1.bf16.msra.mxu0 %v2200
        %2252 = vmatprep.subr.bf16.mxu0 %v2199
        %2253 = vmatpush1.bf16.msra.mxu0 %v2198
        %2254 = vmatprep.subr.bf16.mxu0 %v2197
        %2255 = vmatpush1.bf16.msra.mxu0 %v2196
        %2256 = vmatprep.subr.bf16.mxu0 %v2195
        %2257 = vmatpush1.bf16.msra.mxu0 %v2194
        %2258 = vmatprep.subr.bf16.mxu0 %v2193
        %2259 = vmatpush1.bf16.msra.mxu0 %v2192
        %2260 = vmatprep.subr.bf16.mxu0 %v2191
        %2261 = vmatpush1.bf16.msra.mxu0 %v2190
        %2262 = vmatprep.subr.bf16.mxu0 %v2189
        %2263 = vmatpush1.bf16.msra.mxu0 %v2188
        %2264 = vmatprep.subr.bf16.mxu0 %v2187
        %2265 = vmatpush1.bf16.msra.mxu0 %v2186
        %2266 = vmatprep.subr.bf16.mxu0 %v2217
        %2267 = vmatpush2.bf16.msra.mxu0 %v2216
        %2268 = vmatprep.subr.bf16.mxu0 %v2215
        %2269 = vmatpush2.bf16.msra.mxu0 %v2214
        %2270 = vmatprep.subr.bf16.mxu0 %v2213
        %2271 = vmatpush2.bf16.msra.mxu0 %v2212
        %2272 = vmatprep.subr.bf16.mxu0 %v2211
        %2273 = vmatpush2.bf16.msra.mxu0 %v2210
        %2274 = vmatprep.subr.bf16.mxu0 %v2209
        %2275 = vmatpush2.bf16.msra.mxu0 %v2208
        %2276 = vmatprep.subr.bf16.mxu0 %v2207
        %2277 = vmatpush2.bf16.msra.mxu0 %v2206
        %2278 = vmatprep.subr.bf16.mxu0 %v2205
        %2279 = vmatpush2.bf16.msra.mxu0 %v2204
        %2280 = vmatprep.subr.bf16.mxu0 %v2203
        %2281 = vmatpush2.bf16.msra.mxu0 %v2202
        %2282 = vmatprep.mubr.bf16.mxu0 %v2087
        %2283 = vmatmul.mubr.bf16.gmra.mxu0 %v2086
        %v2284 = vpop.f32.mrf.mxu0
        %v2285 = vadd.f32 %v2076, %v2284
        %v2286 = vpop.f32.mrf.mxu0
        %v2287 = vadd.f32 %v2080, %v2286
        %v2288 = vpop.f32.mrf.mxu0
        %v2289 = vpop.f32.mrf.mxu0
        %2290 = vdwg.mxu0
        %2291 = vst [vmem:[%s354] sm:$0xff] %v2285
        %2292 = vst [vmem:[%s354 + $0x8] sm:$0xff] %v2287
        %s2293 = sand.u32 %s200, 1
        %s2294 = scalar_lea.sflag [#allocation8], %s2293
        %s2295 = sand.u32 %s200, 1
        %s2296 = smul.addr %s2295, 16
        %s2297 = scalar_lea.vmem [#allocation14], %s2296
        // Predicated region
        $region69: #{tpu_custom_call.1} parent=47 // pred_check
          %p2298 = pneg %p210
        $region70: #{tpu_custom_call.1} parent=47 // pred_check_branch
          %2300 = sbr.rel (%p2298) target = $region72
        $region71: #{tpu_custom_call.1} parent=47 // pred_region
          %s2302 = ssub.s32 256, 256
          %2303 = vsyncadd %s2294, %s2302
          %s2304 = smul.addr %s31, 2
          %s2305 = smul.addr %s30, 6
          %s2306 = sadd.s32 %s2304, %s2305
          %s2307 = smul.addr %s2306, 128
          %s2308 = scalar_lea.hbm %s7, %s2307
          %s2310 = sshll.u32 %s2297, 4
          %s2311 = int_to_ptr.vmem [resolvable:$true] %s2310
          %2313 = dma.vmem_to_hbm [thread:$0]  %s2311, 256, %s2308, %s2294
        $region72: #{tpu_custom_call.1} parent=47 // pred_fallthru
          _
      $region48: #{tpu_custom_call.1} parent=5 // pred_fallthru
        _
      %p2314 = scmp.le.s32.totalorder 2, %s21
      // Predicated region
      $region73: #{tpu_custom_call.1} parent=5 // pred_check
        %p2315 = pneg %p2314
      $region74: #{tpu_custom_call.1} parent=5 // pred_check_branch
        %2317 = sbr.rel (%p2315) target = $region76
      $region75: #{tpu_custom_call.1} parent=5 // pred_region
        %s2318 = ssub.s32 %s21, 2
        // Predicated region
        $region77: #{tpu_custom_call.1} parent=75 // pred_check
          %p2319 = pneg %p216
        $region78: #{tpu_custom_call.1} parent=75 // pred_check_branch
          %2321 = sbr.rel (%p2319) target = $region80
        $region79: #{tpu_custom_call.1} parent=75 // pred_region
          %s2322 = sand.u32 %s201, 1
          %s2323 = scalar_lea.sflag [#allocation8], %s2322
          %s2324 = sand.u32 %s201, 1
          %s2325 = smul.addr %s2324, 16
          %s2326 = scalar_lea.vmem [#allocation14], %s2325
          %2327 = dma.done %s2323, 256
        $region80: #{tpu_custom_call.1} parent=75 // pred_fallthru
          _
      $region76: #{tpu_custom_call.1} parent=5 // pred_fallthru
        _
    $region6: #{tpu_custom_call.1} parent=1 // loop_footer
      %s25 = sadd.s32 1, %s21
    $region7: #{tpu_custom_call.1} parent=1 // loop_footer_branch
      %20 = sbr.rel target = $region3
    $region8: #{tpu_custom_call.1} parent=1 // loop_exit
      _
    %2328 = vsyncpa [#allocation7], 1
    %s2329 = scalar_lea.sflag [#allocation7], 1
    %2330 = vsyncpa %s2329, 1
    %2331 = vsyncpa [#allocation10], 1
    %2332 = vsyncpa [#allocation13], 1
    %2333 = vsyncpa [#allocation8], 1
    %s2334 = scalar_lea.sflag [#allocation8], 1
    %2335 = vsyncpa %s2334, 1

</llo_original>
